<compile_context>
chip_gen: v7x
topology: tpu7x:2x2x1
jax: 0.10.0
libtpu: 0.0.40
codegen_flags: <defaults>
</compile_context>

<pallas_src>
import jax
import jax.numpy as jnp
from jax.experimental import pallas as pl
from jax.experimental.pallas import tpu as pltpu

KH, KW = 3, 5      # kernel size of both convs
PH, PW = 1, 2      # 'same' padding for an odd (3,5) kernel, stride 1


def _make_kernel(H, W, Cin, Chid, Cout):
    Wp = W + 2 * PW                 # padded row width
    Hp = H + 2 * PH                 # padded image height
    Mp = H * Wp                     # extended spatial flat (incl. horiz pad cols)
    L = 2 * PW + Hp * Wp            # padded-flat buffer length (with PW guards)
    GUARD = PW + PH * Wp            # interior start inside the padded-flat buffer

    def kernel(x_ref, w1_ref, b1_ref, w2_ref, b2_ref, mask_ref,
               out_ref, p1_ref, hbuf_ref, p2_ref):
        # x_ref   : (1, Cin, L)         channel-major padded-flat input (VMEM)
        # w1_ref  : (Chid, KH*KW*Cin)   conv1 weights, pre-transposed
        # b1_ref  : (Chid, 1)
        # w2_ref  : (Cout, KH*KW*Chid)  conv2 weights, pre-transposed
        # b2_ref  : (Cout, 1)
        # mask_ref: (1, Mp)             1.0 on real output columns, 0.0 on pad cols
        # out_ref : (1, Cout, Mp)       channel-major extended output (lane-dense)
        # p1_ref  : (KH*KW*Cin, Mp)     im2col operand for conv1  (scratch)
        # hbuf_ref: (Chid, L)           padded-flat hidden activation (scratch)
        # p2_ref  : (KH*KW*Chid, Mp)    im2col operand for conv2  (scratch)

        def build_patches(load_slice, dst_ref, C):
            # Each tap: static lane-offset slice -> full-width (C, Mp) store.
            for kh in range(KH):
                for kw in range(KW):
                    idx = kh * KW + kw
                    off = kh * Wp + kw
                    dst_ref[idx * C:(idx + 1) * C, :] = load_slice(off)

        # ---- conv1 + SiLU ----------------------------------------------------
        build_patches(lambda off: x_ref[0, :, off:off + Mp], p1_ref, Cin)
        h = jnp.dot(w1_ref[...], p1_ref[...],
                    preferred_element_type=jnp.float32)            # (Chid, Mp)
        h = h + b1_ref[...]
        h = h * jax.nn.sigmoid(h)                                  # SiLU
        h = h * mask_ref[...]        # zero the horizontal-padding columns

        # Hidden activation stays in VMEM: zero tiny halo bands, write interior.
        hbuf_ref[:, :GUARD] = jnp.zeros((Chid, GUARD), jnp.float32)
        hbuf_ref[:, GUARD + Mp:] = jnp.zeros((Chid, L - GUARD - Mp), jnp.float32)
        hbuf_ref[:, GUARD:GUARD + Mp] = h

        # ---- conv2 + SiLU ----------------------------------------------------
        build_patches(lambda off: hbuf_ref[:, off:off + Mp], p2_ref, Chid)
        y = jnp.dot(w2_ref[...], p2_ref[...],
                    preferred_element_type=jnp.float32)            # (Cout, Mp)
        y = y + b2_ref[...]
        y = y * jax.nn.sigmoid(y)                                  # SiLU

        out_ref[0] = y.astype(out_ref.dtype)   # lane-dense channel-major store

    return kernel, Mp, L


def sebastian_conv_block2(x_nchw, params):
    """Forward pass of Sebastian_ConvBlock2.  Input and output are NCHW."""
    w1t, b1 = params["w1t"], params["b1"]      # (Chid, KH*KW*Cin), (Chid, 1)
    w2t, b2 = params["w2t"], params["b2"]      # (Cout, KH*KW*Chid), (Cout, 1)
    N, Cin, H, W = x_nchw.shape
    Chid, K1 = w1t.shape
    Cout, K2 = w2t.shape
    Hp, Wp = H + 2 * PH, W + 2 * PW

    kernel, Mp, L = _make_kernel(H, W, Cin, Chid, Cout)

    # Channel-major, flattened, zero-padded input buffer (tiny HBM-side prep;
    # replaces the previous NCHW->NHWC transpose + in-kernel padding scatter).
    x_pad = jnp.pad(x_nchw.astype(jnp.float32),
                    ((0, 0), (0, 0), (PH, PH), (PW, PW)))        # (N,Cin,Hp,Wp)
    x_buf = jnp.pad(x_pad.reshape(N, Cin, Hp * Wp),
                    ((0, 0), (0, 0), (PW, PW)))                  # (N,Cin,L)

    # 1.0 on real output columns (w' in [PW, PW+W)), 0.0 on pad columns.
    col = jnp.arange(Wp)
    col_mask = jnp.tile((col >= PW) & (col < PW + W), H)
    col_mask = col_mask.astype(jnp.float32).reshape(1, Mp)

    out_ext = pl.pallas_call(
        kernel,
        out_shape=jax.ShapeDtypeStruct((N, Cout, Mp), jnp.float32),
        grid=(N,),
        in_specs=[
            pl.BlockSpec((1, Cin, L), lambda n: (n, 0, 0)),
            pl.BlockSpec((Chid, K1), lambda n: (0, 0)),
            pl.BlockSpec((Chid, 1), lambda n: (0, 0)),
            pl.BlockSpec((Cout, K2), lambda n: (0, 0)),
            pl.BlockSpec((Cout, 1), lambda n: (0, 0)),
            pl.BlockSpec((1, Mp), lambda n: (0, 0)),
        ],
        out_specs=pl.BlockSpec((1, Cout, Mp), lambda n: (n, 0, 0)),
        scratch_shapes=[
            pltpu.VMEM((KH * KW * Cin, Mp), jnp.float32),     # p1
            pltpu.VMEM((Chid, L), jnp.float32),               # hbuf
            pltpu.VMEM((KH * KW * Chid, Mp), jnp.float32),    # p2
        ],
        compiler_params=pltpu.CompilerParams(
            dimension_semantics=("parallel",),
            vmem_limit_bytes=32 * 1024 * 1024,
        ),
    )(x_buf, w1t, b1, w2t, b2, col_mask)

    # Strip the horizontal padding columns: trivial XLA slice on tiny data.
    out = out_ext.reshape(N, Cout, H, Wp)[:, :, :, PW:PW + W]
    return out.astype(x_nchw.dtype)


def torch_conv_params_to_matmul(w_oihw, b):
    """PyTorch (Cout,Cin,KH,KW) weights -> ((Cout, KH*KW*Cin), (Cout, 1))."""
    Cout, Cin, kh, kw = w_oihw.shape
    w_t = jnp.transpose(w_oihw, (0, 2, 3, 1)).reshape(Cout, kh * kw * Cin)
    return w_t, b.reshape(Cout, 1)


if __name__ == "__main__":
    key = jax.random.PRNGKey(0)
    N, Cin, Chid, Cout, H, W = 2, 4, 8, 4, 16, 16
    k1, k2, k3, k4, k5 = jax.random.split(key, 5)

    x = jax.random.normal(k1, (N, Cin, H, W), jnp.float32)

    # Deterministic init mimicking PyTorch Conv2d layout (Cout, Cin, KH, KW).
    bound1 = 1.0 / (Cin * KH * KW) ** 0.5
    w1_oihw = jax.random.uniform(k2, (Chid, Cin, KH, KW), jnp.float32,
                                 -bound1, bound1)
    b1 = jax.random.uniform(k3, (Chid,), jnp.float32, -bound1, bound1)

    bound2 = 1.0 / (Chid * KH * KW) ** 0.5
    w2_oihw = jax.random.uniform(k4, (Cout, Chid, KH, KW), jnp.float32,
                                 -bound2, bound2)
    b2 = jax.random.uniform(k5, (Cout,), jnp.float32, -bound2, bound2)

    w1t, b1c = torch_conv_params_to_matmul(w1_oihw, b1)
    w2t, b2c = torch_conv_params_to_matmul(w2_oihw, b2)
    params = dict(w1t=w1t, b1=b1c, w2t=w2t, b2=b2c)

    out = jax.block_until_ready(jax.jit(sebastian_conv_block2)(x, params))

    # Pure-JAX reference with PyTorch (NCHW / OIHW) semantics.
    def ref(x):
        y = jax.lax.conv_general_dilated(
            x, w1_oihw, (1, 1), "SAME",
            dimension_numbers=("NCHW", "OIHW", "NCHW"))
        y = y + b1[None, :, None, None]
        y = y * jax.nn.sigmoid(y)
        y = jax.lax.conv_general_dilated(
            y, w2_oihw, (1, 1), "SAME",
            dimension_numbers=("NCHW", "OIHW", "NCHW"))
        y = y + b2[None, :, None, None]
        return y * jax.nn.sigmoid(y)

    expected = jax.block_until_ready(ref(x))
    assert out.shape == expected.shape == (N, Cout, H, W)
    err = float(jnp.max(jnp.abs(out - expected)))
    assert jnp.allclose(out, expected, atol=1e-4, rtol=1e-4), err
    print("KERNEL_OK")
</pallas_src>

<mosaic_0001>
module attributes {stable_mosaic.version = 11 : i64} {
  func.func @kernel(%arg0: i32, %arg1: memref<1x4x364xf32, #tpu.memory_space<vmem>>, %arg2: memref<8x60xf32, #tpu.memory_space<vmem>>, %arg3: memref<8x1xf32, #tpu.memory_space<vmem>>, %arg4: memref<4x120xf32, #tpu.memory_space<vmem>>, %arg5: memref<4x1xf32, #tpu.memory_space<vmem>>, %arg6: memref<1x320xf32, #tpu.memory_space<vmem>>, %arg7: memref<1x4x320xf32, #tpu.memory_space<vmem>>, %arg8: memref<60x320xf32, #tpu.memory_space<vmem>>, %arg9: memref<8x364xf32, #tpu.memory_space<vmem>>, %arg10: memref<120x320xf32, #tpu.memory_space<vmem>>) attributes {dimension_semantics = [#tpu.dimension_semantics<parallel>], iteration_bounds = array<i64: 2>, scalar_prefetch = 0 : i64, scratch_operands = 3 : i64, tpu.core_type = #tpu.core_type<tc>, window_params = [{transform_indices = @transform_0, window_bounds = array<i64: 1, 4, 364>}, {pipeline_mode = #tpu.pipeline_mode<synchronous>, transform_indices = @transform_1, window_bounds = array<i64: 8, 60>}, {pipeline_mode = #tpu.pipeline_mode<synchronous>, transform_indices = @transform_2, window_bounds = array<i64: 8, 1>}, {pipeline_mode = #tpu.pipeline_mode<synchronous>, transform_indices = @transform_3, window_bounds = array<i64: 4, 120>}, {pipeline_mode = #tpu.pipeline_mode<synchronous>, transform_indices = @transform_4, window_bounds = array<i64: 4, 1>}, {pipeline_mode = #tpu.pipeline_mode<synchronous>, transform_indices = @transform_5, window_bounds = array<i64: 1, 320>}, {transform_indices = @transform_6, window_bounds = array<i64: 1, 4, 320>}]} {
    %c0 = arith.constant 0 : index
    %c0_0 = arith.constant 0 : index
    %c0_1 = arith.constant 0 : index
    %0 = vector.load %arg1[%c0, %c0_0, %c0_1] : memref<1x4x364xf32, #tpu.memory_space<vmem>>, vector<1x4x320xf32>
    %1 = vector.shape_cast %0 : vector<1x4x320xf32> to vector<4x320xf32>
    %c0_2 = arith.constant 0 : index
    %c0_3 = arith.constant 0 : index
    %2 = vector.load %arg8[%c0_2, %c0_3] : memref<60x320xf32, #tpu.memory_space<vmem>>, vector<4x320xf32>
    tpu.vector_store %arg8[%c0_2, %c0_3], %1 {strides = array<i32>} : memref<60x320xf32, #tpu.memory_space<vmem>>, vector<4x320xf32>,
    %c0_4 = arith.constant 0 : index
    %c0_5 = arith.constant 0 : index
    %c1 = arith.constant 1 : index
    %3 = vector.load %arg1[%c0_4, %c0_5, %c1] : memref<1x4x364xf32, #tpu.memory_space<vmem>>, vector<1x4x320xf32>
    %4 = vector.shape_cast %3 : vector<1x4x320xf32> to vector<4x320xf32>
    %c4 = arith.constant 4 : index
    %c0_6 = arith.constant 0 : index
    %5 = vector.load %arg8[%c4, %c0_6] : memref<60x320xf32, #tpu.memory_space<vmem>>, vector<4x320xf32>
    tpu.vector_store %arg8[%c4, %c0_6], %4 {strides = array<i32>} : memref<60x320xf32, #tpu.memory_space<vmem>>, vector<4x320xf32>,
    %c0_7 = arith.constant 0 : index
    %c0_8 = arith.constant 0 : index
    %c2 = arith.constant 2 : index
    %6 = vector.load %arg1[%c0_7, %c0_8, %c2] : memref<1x4x364xf32, #tpu.memory_space<vmem>>, vector<1x4x320xf32>
    %7 = vector.shape_cast %6 : vector<1x4x320xf32> to vector<4x320xf32>
    %c8 = arith.constant 8 : index
    %c0_9 = arith.constant 0 : index
    %8 = vector.load %arg8[%c8, %c0_9] : memref<60x320xf32, #tpu.memory_space<vmem>>, vector<4x320xf32>
    tpu.vector_store %arg8[%c8, %c0_9], %7 {strides = array<i32>} : memref<60x320xf32, #tpu.memory_space<vmem>>, vector<4x320xf32>,
    %c0_10 = arith.constant 0 : index
    %c0_11 = arith.constant 0 : index
    %c3 = arith.constant 3 : index
    %9 = vector.load %arg1[%c0_10, %c0_11, %c3] : memref<1x4x364xf32, #tpu.memory_space<vmem>>, vector<1x4x320xf32>
    %10 = vector.shape_cast %9 : vector<1x4x320xf32> to vector<4x320xf32>
    %c12 = arith.constant 12 : index
    %c0_12 = arith.constant 0 : index
    %11 = vector.load %arg8[%c12, %c0_12] : memref<60x320xf32, #tpu.memory_space<vmem>>, vector<4x320xf32>
    tpu.vector_store %arg8[%c12, %c0_12], %10 {strides = array<i32>} : memref<60x320xf32, #tpu.memory_space<vmem>>, vector<4x320xf32>,
    %c0_13 = arith.constant 0 : index
    %c0_14 = arith.constant 0 : index
    %c4_15 = arith.constant 4 : index
    %12 = vector.load %arg1[%c0_13, %c0_14, %c4_15] : memref<1x4x364xf32, #tpu.memory_space<vmem>>, vector<1x4x320xf32>
    %13 = vector.shape_cast %12 : vector<1x4x320xf32> to vector<4x320xf32>
    %c16 = arith.constant 16 : index
    %c0_16 = arith.constant 0 : index
    %14 = vector.load %arg8[%c16, %c0_16] : memref<60x320xf32, #tpu.memory_space<vmem>>, vector<4x320xf32>
    tpu.vector_store %arg8[%c16, %c0_16], %13 {strides = array<i32>} : memref<60x320xf32, #tpu.memory_space<vmem>>, vector<4x320xf32>,
    %c0_17 = arith.constant 0 : index
    %c0_18 = arith.constant 0 : index
    %c20 = arith.constant 20 : index
    %15 = vector.load %arg1[%c0_17, %c0_18, %c20] : memref<1x4x364xf32, #tpu.memory_space<vmem>>, vector<1x4x320xf32>
    %16 = vector.shape_cast %15 : vector<1x4x320xf32> to vector<4x320xf32>
    %c20_19 = arith.constant 20 : index
    %c0_20 = arith.constant 0 : index
    %17 = vector.load %arg8[%c20_19, %c0_20] : memref<60x320xf32, #tpu.memory_space<vmem>>, vector<4x320xf32>
    tpu.vector_store %arg8[%c20_19, %c0_20], %16 {strides = array<i32>} : memref<60x320xf32, #tpu.memory_space<vmem>>, vector<4x320xf32>,
    %c0_21 = arith.constant 0 : index
    %c0_22 = arith.constant 0 : index
    %c21 = arith.constant 21 : index
    %18 = vector.load %arg1[%c0_21, %c0_22, %c21] : memref<1x4x364xf32, #tpu.memory_space<vmem>>, vector<1x4x320xf32>
    %19 = vector.shape_cast %18 : vector<1x4x320xf32> to vector<4x320xf32>
    %c24 = arith.constant 24 : index
    %c0_23 = arith.constant 0 : index
    %20 = vector.load %arg8[%c24, %c0_23] : memref<60x320xf32, #tpu.memory_space<vmem>>, vector<4x320xf32>
    tpu.vector_store %arg8[%c24, %c0_23], %19 {strides = array<i32>} : memref<60x320xf32, #tpu.memory_space<vmem>>, vector<4x320xf32>,
    %c0_24 = arith.constant 0 : index
    %c0_25 = arith.constant 0 : index
    %c22 = arith.constant 22 : index
    %21 = vector.load %arg1[%c0_24, %c0_25, %c22] : memref<1x4x364xf32, #tpu.memory_space<vmem>>, vector<1x4x320xf32>
    %22 = vector.shape_cast %21 : vector<1x4x320xf32> to vector<4x320xf32>
    %c28 = arith.constant 28 : index
    %c0_26 = arith.constant 0 : index
    %23 = vector.load %arg8[%c28, %c0_26] : memref<60x320xf32, #tpu.memory_space<vmem>>, vector<4x320xf32>
    tpu.vector_store %arg8[%c28, %c0_26], %22 {strides = array<i32>} : memref<60x320xf32, #tpu.memory_space<vmem>>, vector<4x320xf32>,
    %c0_27 = arith.constant 0 : index
    %c0_28 = arith.constant 0 : index
    %c23 = arith.constant 23 : index
    %24 = vector.load %arg1[%c0_27, %c0_28, %c23] : memref<1x4x364xf32, #tpu.memory_space<vmem>>, vector<1x4x320xf32>
    %25 = vector.shape_cast %24 : vector<1x4x320xf32> to vector<4x320xf32>
    %c32 = arith.constant 32 : index
    %c0_29 = arith.constant 0 : index
    %26 = vector.load %arg8[%c32, %c0_29] : memref<60x320xf32, #tpu.memory_space<vmem>>, vector<4x320xf32>
    tpu.vector_store %arg8[%c32, %c0_29], %25 {strides = array<i32>} : memref<60x320xf32, #tpu.memory_space<vmem>>, vector<4x320xf32>,
    %c0_30 = arith.constant 0 : index
    %c0_31 = arith.constant 0 : index
    %c24_32 = arith.constant 24 : index
    %27 = vector.load %arg1[%c0_30, %c0_31, %c24_32] : memref<1x4x364xf32, #tpu.memory_space<vmem>>, vector<1x4x320xf32>
    %28 = vector.shape_cast %27 : vector<1x4x320xf32> to vector<4x320xf32>
    %c36 = arith.constant 36 : index
    %c0_33 = arith.constant 0 : index
    %29 = vector.load %arg8[%c36, %c0_33] : memref<60x320xf32, #tpu.memory_space<vmem>>, vector<4x320xf32>
    tpu.vector_store %arg8[%c36, %c0_33], %28 {strides = array<i32>} : memref<60x320xf32, #tpu.memory_space<vmem>>, vector<4x320xf32>,
    %c0_34 = arith.constant 0 : index
    %c0_35 = arith.constant 0 : index
    %c40 = arith.constant 40 : index
    %30 = vector.load %arg1[%c0_34, %c0_35, %c40] : memref<1x4x364xf32, #tpu.memory_space<vmem>>, vector<1x4x320xf32>
    %31 = vector.shape_cast %30 : vector<1x4x320xf32> to vector<4x320xf32>
    %c40_36 = arith.constant 40 : index
    %c0_37 = arith.constant 0 : index
    %32 = vector.load %arg8[%c40_36, %c0_37] : memref<60x320xf32, #tpu.memory_space<vmem>>, vector<4x320xf32>
    tpu.vector_store %arg8[%c40_36, %c0_37], %31 {strides = array<i32>} : memref<60x320xf32, #tpu.memory_space<vmem>>, vector<4x320xf32>,
    %c0_38 = arith.constant 0 : index
    %c0_39 = arith.constant 0 : index
    %c41 = arith.constant 41 : index
    %33 = vector.load %arg1[%c0_38, %c0_39, %c41] : memref<1x4x364xf32, #tpu.memory_space<vmem>>, vector<1x4x320xf32>
    %34 = vector.shape_cast %33 : vector<1x4x320xf32> to vector<4x320xf32>
    %c44 = arith.constant 44 : index
    %c0_40 = arith.constant 0 : index
    %35 = vector.load %arg8[%c44, %c0_40] : memref<60x320xf32, #tpu.memory_space<vmem>>, vector<4x320xf32>
    tpu.vector_store %arg8[%c44, %c0_40], %34 {strides = array<i32>} : memref<60x320xf32, #tpu.memory_space<vmem>>, vector<4x320xf32>,
    %c0_41 = arith.constant 0 : index
    %c0_42 = arith.constant 0 : index
    %c42 = arith.constant 42 : index
    %36 = vector.load %arg1[%c0_41, %c0_42, %c42] : memref<1x4x364xf32, #tpu.memory_space<vmem>>, vector<1x4x320xf32>
    %37 = vector.shape_cast %36 : vector<1x4x320xf32> to vector<4x320xf32>
    %c48 = arith.constant 48 : index
    %c0_43 = arith.constant 0 : index
    %38 = vector.load %arg8[%c48, %c0_43] : memref<60x320xf32, #tpu.memory_space<vmem>>, vector<4x320xf32>
    tpu.vector_store %arg8[%c48, %c0_43], %37 {strides = array<i32>} : memref<60x320xf32, #tpu.memory_space<vmem>>, vector<4x320xf32>,
    %c0_44 = arith.constant 0 : index
    %c0_45 = arith.constant 0 : index
    %c43 = arith.constant 43 : index
    %39 = vector.load %arg1[%c0_44, %c0_45, %c43] : memref<1x4x364xf32, #tpu.memory_space<vmem>>, vector<1x4x320xf32>
    %40 = vector.shape_cast %39 : vector<1x4x320xf32> to vector<4x320xf32>
    %c52 = arith.constant 52 : index
    %c0_46 = arith.constant 0 : index
    %41 = vector.load %arg8[%c52, %c0_46] : memref<60x320xf32, #tpu.memory_space<vmem>>, vector<4x320xf32>
    tpu.vector_store %arg8[%c52, %c0_46], %40 {strides = array<i32>} : memref<60x320xf32, #tpu.memory_space<vmem>>, vector<4x320xf32>,
    %c0_47 = arith.constant 0 : index
    %c0_48 = arith.constant 0 : index
    %c44_49 = arith.constant 44 : index
    %42 = vector.load %arg1[%c0_47, %c0_48, %c44_49] : memref<1x4x364xf32, #tpu.memory_space<vmem>>, vector<1x4x320xf32>
    %43 = vector.shape_cast %42 : vector<1x4x320xf32> to vector<4x320xf32>
    %c56 = arith.constant 56 : index
    %c0_50 = arith.constant 0 : index
    %44 = vector.load %arg8[%c56, %c0_50] : memref<60x320xf32, #tpu.memory_space<vmem>>, vector<4x320xf32>
    tpu.vector_store %arg8[%c56, %c0_50], %43 {strides = array<i32>} : memref<60x320xf32, #tpu.memory_space<vmem>>, vector<4x320xf32>,
    %c0_51 = arith.constant 0 : index
    %c0_52 = arith.constant 0 : index
    %45 = vector.load %arg2[%c0_51, %c0_52] : memref<8x60xf32, #tpu.memory_space<vmem>>, vector<8x60xf32>
    %c0_53 = arith.constant 0 : index
    %c0_54 = arith.constant 0 : index
    %46 = vector.load %arg8[%c0_53, %c0_54] : memref<60x320xf32, #tpu.memory_space<vmem>>, vector<60x320xf32>
    %cst = arith.constant dense<0.000000e+00> : vector<8x320xf32>
    %47 = tpu.matmul %45, %46, %cst {dimension_numbers = #tpu.dot_dimension_numbers<[1], [0], [0], [1], [0, 0, 1, 1], [], []>} : vector<8x60xf32>, vector<60x320xf32>, vector<8x320xf32> -> vector<8x320xf32>
    %c0_55 = arith.constant 0 : index
    %c0_56 = arith.constant 0 : index
    %48 = vector.load %arg3[%c0_55, %c0_56] : memref<8x1xf32, #tpu.memory_space<vmem>>, vector<8x1xf32>
    %49 = vector.broadcast %48 : vector<8x1xf32> to vector<8x320xf32>
    %50 = arith.addf %47, %49 : vector<8x320xf32>
    %51 = arith.negf %50 : vector<8x320xf32>
    %52 = math.exp %51 : vector<8x320xf32>
    %cst_57 = arith.constant 1.000000e+00 : f32
    %53 = vector.broadcast %cst_57 : f32 to vector<8x320xf32>
    %54 = arith.addf %53, %52 : vector<8x320xf32>
    %55 = arith.divf %53, %54 : vector<8x320xf32>
    %56 = arith.mulf %50, %55 : vector<8x320xf32>
    %c0_58 = arith.constant 0 : index
    %c0_59 = arith.constant 0 : index
    %57 = vector.load %arg6[%c0_58, %c0_59] : memref<1x320xf32, #tpu.memory_space<vmem>>, vector<1x320xf32>
    %58 = vector.broadcast %57 : vector<1x320xf32> to vector<8x320xf32>
    %59 = arith.mulf %56, %58 : vector<8x320xf32>
    %cst_60 = arith.constant 0.000000e+00 : f32
    %60 = vector.broadcast %cst_60 : f32 to vector<8x22xf32>
    %c0_61 = arith.constant 0 : index
    %c0_62 = arith.constant 0 : index
    %61 = vector.load %arg9[%c0_61, %c0_62] : memref<8x364xf32, #tpu.memory_space<vmem>>, vector<8x22xf32>
    tpu.vector_store %arg9[%c0_61, %c0_62], %60 {strides = array<i32>} : memref<8x364xf32, #tpu.memory_space<vmem>>, vector<8x22xf32>,
    %cst_63 = arith.constant 0.000000e+00 : f32
    %62 = vector.broadcast %cst_63 : f32 to vector<8x22xf32>
    %c0_64 = arith.constant 0 : index
    %c342 = arith.constant 342 : index
    %63 = vector.load %arg9[%c0_64, %c342] : memref<8x364xf32, #tpu.memory_space<vmem>>, vector<8x22xf32>
    tpu.vector_store %arg9[%c0_64, %c342], %62 {strides = array<i32>} : memref<8x364xf32, #tpu.memory_space<vmem>>, vector<8x22xf32>,
    %c0_65 = arith.constant 0 : index
    %c22_66 = arith.constant 22 : index
    %64 = vector.load %arg9[%c0_65, %c22_66] : memref<8x364xf32, #tpu.memory_space<vmem>>, vector<8x320xf32>
    tpu.vector_store %arg9[%c0_65, %c22_66], %59 {strides = array<i32>} : memref<8x364xf32, #tpu.memory_space<vmem>>, vector<8x320xf32>,
    %c0_67 = arith.constant 0 : index
    %c0_68 = arith.constant 0 : index
    %65 = vector.load %arg9[%c0_67, %c0_68] : memref<8x364xf32, #tpu.memory_space<vmem>>, vector<8x320xf32>
    %c0_69 = arith.constant 0 : index
    %c0_70 = arith.constant 0 : index
    %66 = vector.load %arg10[%c0_69, %c0_70] : memref<120x320xf32, #tpu.memory_space<vmem>>, vector<8x320xf32>
    tpu.vector_store %arg10[%c0_69, %c0_70], %65 {strides = array<i32>} : memref<120x320xf32, #tpu.memory_space<vmem>>, vector<8x320xf32>,
    %c0_71 = arith.constant 0 : index
    %c1_72 = arith.constant 1 : index
    %67 = vector.load %arg9[%c0_71, %c1_72] : memref<8x364xf32, #tpu.memory_space<vmem>>, vector<8x320xf32>
    %c8_73 = arith.constant 8 : index
    %c0_74 = arith.constant 0 : index
    %68 = vector.load %arg10[%c8_73, %c0_74] : memref<120x320xf32, #tpu.memory_space<vmem>>, vector<8x320xf32>
    tpu.vector_store %arg10[%c8_73, %c0_74], %67 {strides = array<i32>} : memref<120x320xf32, #tpu.memory_space<vmem>>, vector<8x320xf32>,
    %c0_75 = arith.constant 0 : index
    %c2_76 = arith.constant 2 : index
    %69 = vector.load %arg9[%c0_75, %c2_76] : memref<8x364xf32, #tpu.memory_space<vmem>>, vector<8x320xf32>
    %c16_77 = arith.constant 16 : index
    %c0_78 = arith.constant 0 : index
    %70 = vector.load %arg10[%c16_77, %c0_78] : memref<120x320xf32, #tpu.memory_space<vmem>>, vector<8x320xf32>
    tpu.vector_store %arg10[%c16_77, %c0_78], %69 {strides = array<i32>} : memref<120x320xf32, #tpu.memory_space<vmem>>, vector<8x320xf32>,
    %c0_79 = arith.constant 0 : index
    %c3_80 = arith.constant 3 : index
    %71 = vector.load %arg9[%c0_79, %c3_80] : memref<8x364xf32, #tpu.memory_space<vmem>>, vector<8x320xf32>
    %c24_81 = arith.constant 24 : index
    %c0_82 = arith.constant 0 : index
    %72 = vector.load %arg10[%c24_81, %c0_82] : memref<120x320xf32, #tpu.memory_space<vmem>>, vector<8x320xf32>
    tpu.vector_store %arg10[%c24_81, %c0_82], %71 {strides = array<i32>} : memref<120x320xf32, #tpu.memory_space<vmem>>, vector<8x320xf32>,
    %c0_83 = arith.constant 0 : index
    %c4_84 = arith.constant 4 : index
    %73 = vector.load %arg9[%c0_83, %c4_84] : memref<8x364xf32, #tpu.memory_space<vmem>>, vector<8x320xf32>
    %c32_85 = arith.constant 32 : index
    %c0_86 = arith.constant 0 : index
    %74 = vector.load %arg10[%c32_85, %c0_86] : memref<120x320xf32, #tpu.memory_space<vmem>>, vector<8x320xf32>
    tpu.vector_store %arg10[%c32_85, %c0_86], %73 {strides = array<i32>} : memref<120x320xf32, #tpu.memory_space<vmem>>, vector<8x320xf32>,
    %c0_87 = arith.constant 0 : index
    %c20_88 = arith.constant 20 : index
    %75 = vector.load %arg9[%c0_87, %c20_88] : memref<8x364xf32, #tpu.memory_space<vmem>>, vector<8x320xf32>
    %c40_89 = arith.constant 40 : index
    %c0_90 = arith.constant 0 : index
    %76 = vector.load %arg10[%c40_89, %c0_90] : memref<120x320xf32, #tpu.memory_space<vmem>>, vector<8x320xf32>
    tpu.vector_store %arg10[%c40_89, %c0_90], %75 {strides = array<i32>} : memref<120x320xf32, #tpu.memory_space<vmem>>, vector<8x320xf32>,
    %c0_91 = arith.constant 0 : index
    %c21_92 = arith.constant 21 : index
    %77 = vector.load %arg9[%c0_91, %c21_92] : memref<8x364xf32, #tpu.memory_space<vmem>>, vector<8x320xf32>
    %c48_93 = arith.constant 48 : index
    %c0_94 = arith.constant 0 : index
    %78 = vector.load %arg10[%c48_93, %c0_94] : memref<120x320xf32, #tpu.memory_space<vmem>>, vector<8x320xf32>
    tpu.vector_store %arg10[%c48_93, %c0_94], %77 {strides = array<i32>} : memref<120x320xf32, #tpu.memory_space<vmem>>, vector<8x320xf32>,
    %c0_95 = arith.constant 0 : index
    %c22_96 = arith.constant 22 : index
    %79 = vector.load %arg9[%c0_95, %c22_96] : memref<8x364xf32, #tpu.memory_space<vmem>>, vector<8x320xf32>
    %c56_97 = arith.constant 56 : index
    %c0_98 = arith.constant 0 : index
    %80 = vector.load %arg10[%c56_97, %c0_98] : memref<120x320xf32, #tpu.memory_space<vmem>>, vector<8x320xf32>
    tpu.vector_store %arg10[%c56_97, %c0_98], %79 {strides = array<i32>} : memref<120x320xf32, #tpu.memory_space<vmem>>, vector<8x320xf32>,
    %c0_99 = arith.constant 0 : index
    %c23_100 = arith.constant 23 : index
    %81 = vector.load %arg9[%c0_99, %c23_100] : memref<8x364xf32, #tpu.memory_space<vmem>>, vector<8x320xf32>
    %c64 = arith.constant 64 : index
    %c0_101 = arith.constant 0 : index
    %82 = vector.load %arg10[%c64, %c0_101] : memref<120x320xf32, #tpu.memory_space<vmem>>, vector<8x320xf32>
    tpu.vector_store %arg10[%c64, %c0_101], %81 {strides = array<i32>} : memref<120x320xf32, #tpu.memory_space<vmem>>, vector<8x320xf32>,
    %c0_102 = arith.constant 0 : index
    %c24_103 = arith.constant 24 : index
    %83 = vector.load %arg9[%c0_102, %c24_103] : memref<8x364xf32, #tpu.memory_space<vmem>>, vector<8x320xf32>
    %c72 = arith.constant 72 : index
    %c0_104 = arith.constant 0 : index
    %84 = vector.load %arg10[%c72, %c0_104] : memref<120x320xf32, #tpu.memory_space<vmem>>, vector<8x320xf32>
    tpu.vector_store %arg10[%c72, %c0_104], %83 {strides = array<i32>} : memref<120x320xf32, #tpu.memory_space<vmem>>, vector<8x320xf32>,
    %c0_105 = arith.constant 0 : index
    %c40_106 = arith.constant 40 : index
    %85 = vector.load %arg9[%c0_105, %c40_106] : memref<8x364xf32, #tpu.memory_space<vmem>>, vector<8x320xf32>
    %c80 = arith.constant 80 : index
    %c0_107 = arith.constant 0 : index
    %86 = vector.load %arg10[%c80, %c0_107] : memref<120x320xf32, #tpu.memory_space<vmem>>, vector<8x320xf32>
    tpu.vector_store %arg10[%c80, %c0_107], %85 {strides = array<i32>} : memref<120x320xf32, #tpu.memory_space<vmem>>, vector<8x320xf32>,
    %c0_108 = arith.constant 0 : index
    %c41_109 = arith.constant 41 : index
    %87 = vector.load %arg9[%c0_108, %c41_109] : memref<8x364xf32, #tpu.memory_space<vmem>>, vector<8x320xf32>
    %c88 = arith.constant 88 : index
    %c0_110 = arith.constant 0 : index
    %88 = vector.load %arg10[%c88, %c0_110] : memref<120x320xf32, #tpu.memory_space<vmem>>, vector<8x320xf32>
    tpu.vector_store %arg10[%c88, %c0_110], %87 {strides = array<i32>} : memref<120x320xf32, #tpu.memory_space<vmem>>, vector<8x320xf32>,
    %c0_111 = arith.constant 0 : index
    %c42_112 = arith.constant 42 : index
    %89 = vector.load %arg9[%c0_111, %c42_112] : memref<8x364xf32, #tpu.memory_space<vmem>>, vector<8x320xf32>
    %c96 = arith.constant 96 : index
    %c0_113 = arith.constant 0 : index
    %90 = vector.load %arg10[%c96, %c0_113] : memref<120x320xf32, #tpu.memory_space<vmem>>, vector<8x320xf32>
    tpu.vector_store %arg10[%c96, %c0_113], %89 {strides = array<i32>} : memref<120x320xf32, #tpu.memory_space<vmem>>, vector<8x320xf32>,
    %c0_114 = arith.constant 0 : index
    %c43_115 = arith.constant 43 : index
    %91 = vector.load %arg9[%c0_114, %c43_115] : memref<8x364xf32, #tpu.memory_space<vmem>>, vector<8x320xf32>
    %c104 = arith.constant 104 : index
    %c0_116 = arith.constant 0 : index
    %92 = vector.load %arg10[%c104, %c0_116] : memref<120x320xf32, #tpu.memory_space<vmem>>, vector<8x320xf32>
    tpu.vector_store %arg10[%c104, %c0_116], %91 {strides = array<i32>} : memref<120x320xf32, #tpu.memory_space<vmem>>, vector<8x320xf32>,
    %c0_117 = arith.constant 0 : index
    %c44_118 = arith.constant 44 : index
    %93 = vector.load %arg9[%c0_117, %c44_118] : memref<8x364xf32, #tpu.memory_space<vmem>>, vector<8x320xf32>
    %c112 = arith.constant 112 : index
    %c0_119 = arith.constant 0 : index
    %94 = vector.load %arg10[%c112, %c0_119] : memref<120x320xf32, #tpu.memory_space<vmem>>, vector<8x320xf32>
    tpu.vector_store %arg10[%c112, %c0_119], %93 {strides = array<i32>} : memref<120x320xf32, #tpu.memory_space<vmem>>, vector<8x320xf32>,
    %c0_120 = arith.constant 0 : index
    %c0_121 = arith.constant 0 : index
    %95 = vector.load %arg4[%c0_120, %c0_121] : memref<4x120xf32, #tpu.memory_space<vmem>>, vector<4x120xf32>
    %c0_122 = arith.constant 0 : index
    %c0_123 = arith.constant 0 : index
    %96 = vector.load %arg10[%c0_122, %c0_123] : memref<120x320xf32, #tpu.memory_space<vmem>>, vector<120x320xf32>
    %cst_124 = arith.constant dense<0.000000e+00> : vector<4x320xf32>
    %97 = tpu.matmul %95, %96, %cst_124 {dimension_numbers = #tpu.dot_dimension_numbers<[1], [0], [0], [1], [0, 0, 1, 1], [], []>} : vector<4x120xf32>, vector<120x320xf32>, vector<4x320xf32> -> vector<4x320xf32>
    %c0_125 = arith.constant 0 : index
    %c0_126 = arith.constant 0 : index
    %98 = vector.load %arg5[%c0_125, %c0_126] : memref<4x1xf32, #tpu.memory_space<vmem>>, vector<4x1xf32>
    %99 = vector.broadcast %98 : vector<4x1xf32> to vector<4x320xf32>
    %100 = arith.addf %97, %99 : vector<4x320xf32>
    %101 = arith.negf %100 : vector<4x320xf32>
    %102 = math.exp %101 : vector<4x320xf32>
    %cst_127 = arith.constant 1.000000e+00 : f32
    %103 = vector.broadcast %cst_127 : f32 to vector<4x320xf32>
    %104 = arith.addf %103, %102 : vector<4x320xf32>
    %105 = arith.divf %103, %104 : vector<4x320xf32>
    %106 = arith.mulf %100, %105 : vector<4x320xf32>
    %c0_128 = arith.constant 0 : index
    %c0_129 = arith.constant 0 : index
    %c0_130 = arith.constant 0 : index
    %107 = vector.load %arg7[%c0_128, %c0_129, %c0_130] : memref<1x4x320xf32, #tpu.memory_space<vmem>>, vector<1x4x320xf32>
    %108 = vector.shape_cast %107 : vector<1x4x320xf32> to vector<4x320xf32>
    %109 = vector.shape_cast %106 : vector<4x320xf32> to vector<1x4x320xf32>
    tpu.vector_store %arg7[%c0_128, %c0_129, %c0_130], %109 {strides = array<i32>} : memref<1x4x320xf32, #tpu.memory_space<vmem>>, vector<1x4x320xf32>,
    return
  }
  func.func @transform_0(%arg0: i32) -> (i32, i32, i32) {
    %c0_i32 = arith.constant 0 : i32
    %c0_i32_0 = arith.constant 0 : i32
    %c0_i32_1 = arith.constant 0 : i32
    return %arg0, %c0_i32, %c0_i32_0 : i32, i32, i32
  }
  func.func @transform_1(%arg0: i32) -> (i32, i32) {
    %c0_i32 = arith.constant 0 : i32
    %c0_i32_0 = arith.constant 0 : i32
    %c0_i32_1 = arith.constant 0 : i32
    return %c0_i32, %c0_i32_0 : i32, i32
  }
  func.func @transform_2(%arg0: i32) -> (i32, i32) {
    %c0_i32 = arith.constant 0 : i32
    %c0_i32_0 = arith.constant 0 : i32
    %c0_i32_1 = arith.constant 0 : i32
    return %c0_i32, %c0_i32_0 : i32, i32
  }
  func.func @transform_3(%arg0: i32) -> (i32, i32) {
    %c0_i32 = arith.constant 0 : i32
    %c0_i32_0 = arith.constant 0 : i32
    %c0_i32_1 = arith.constant 0 : i32
    return %c0_i32, %c0_i32_0 : i32, i32
  }
  func.func @transform_4(%arg0: i32) -> (i32, i32) {
    %c0_i32 = arith.constant 0 : i32
    %c0_i32_0 = arith.constant 0 : i32
    %c0_i32_1 = arith.constant 0 : i32
    return %c0_i32, %c0_i32_0 : i32, i32
  }
  func.func @transform_5(%arg0: i32) -> (i32, i32) {
    %c0_i32 = arith.constant 0 : i32
    %c0_i32_0 = arith.constant 0 : i32
    %c0_i32_1 = arith.constant 0 : i32
    return %c0_i32, %c0_i32_0 : i32, i32
  }
  func.func @transform_6(%arg0: i32) -> (i32, i32, i32) {
    %c0_i32 = arith.constant 0 : i32
    %c0_i32_0 = arith.constant 0 : i32
    %c0_i32_1 = arith.constant 0 : i32
    return %arg0, %c0_i32, %c0_i32_0 : i32, i32, i32
  }
}

</mosaic_0001>

<llo_original>
// kernel: sebastian_conv_block2.1
$region0: #{sebastian_conv_block2.1}
  #allocation0 [shape = 'u32[]', space=smem, size = 0x4, offset = 0x4, fixed_abs, tag = 'smem constant byte address 0x4 - core index']
  #allocation1 [shape = 'u32[144,128]{1,0:T(1,128)}', space=vmem, size = 0x12000, scoped, tag = 'internal scratch']
  #allocation2 [shape = 'f32[60,320]{1,0:T(8,128)}', space=vmem, size = 0x18000, scoped, tag = 'scratch operand']
  #allocation3 [shape = 'f32[8,364]{1,0:T(8,128)}', space=vmem, size = 0x3000, scoped, tag = 'scratch operand']
  #allocation4 [shape = 'f32[120,320]{1,0:T(8,128)}', space=vmem, size = 0x2d000, scoped, tag = 'scratch operand']
  %s0 = inlined_call_operand.vmem [shape: f32[2,4,364], index: 0, kind: input, shape index: {}]
  %s1 = inlined_call_operand.vmem [shape: f32[8,60], index: 1, kind: input, shape index: {}]
  %s2 = inlined_call_operand.vmem [shape: f32[8,1], index: 2, kind: input, shape index: {}]
  %s3 = inlined_call_operand.vmem [shape: f32[4,120], index: 3, kind: input, shape index: {}]
  %s4 = inlined_call_operand.vmem [shape: f32[4,1], index: 4, kind: input, shape index: {}]
  %s5 = inlined_call_operand.vmem [shape: f32[1,320], index: 5, kind: input, shape index: {}]
  %s6 = inlined_call_operand.vmem [shape: f32[2,4,320], index: 6, kind: output, shape index: {}]
  %s7 = sld [smem:[#allocation0]]
  $region57: #{sebastian_conv_block2.1} parent=0
    _
  %s9 = ssub.s32 1, %s7
  %s10 = scalar_select 0, %s9, %s7
  loop: start=0, step=1, limit=4
  $region2: #{sebastian_conv_block2.1} parent=0 // loop_pre_header
    _
  $region3: #{sebastian_conv_block2.1} parent=0 // loop_header
    %s12 = sphi 0, %s16
    %p13 = scmp.ge.s32.totalorder %s12, 4
    %s22 = sphi 0, %s24
    %s25 = sphi 0, %s22
    %s26 = sphi 0, %s25
    %s42 = sphi 0, %s26
    %s46 = sphi 0, %s46
    %s48 = sphi 0, %s46
    %s49 = sphi 0, %s48
    %s63 = sphi 0, %s49
    %s67 = sphi 0, %s67
    %s69 = sphi 0, %s67
    %s70 = sphi 0, %s69
    %s84 = sphi 0, %s70
    %s88 = sphi 0, %s88
    %s90 = sphi 0, %s88
    %s91 = sphi 0, %s90
    %s105 = sphi 0, %s91
    %s109 = sphi 0, %s109
    %s111 = sphi 0, %s109
    %s112 = sphi 0, %s111
    %s126 = sphi 0, %s112
    %s130 = sphi 0, %s130
    %s132 = sphi 0, %s130
    %s133 = sphi 0, %s132
    %s147 = sphi 0, %s133
    %s153 = sphi 0, %s155
    %s156 = sphi 0, %s153
    %s157 = sphi 0, %s156
    %s173 = sphi 0, %s157
  $region4: #{sebastian_conv_block2.1} parent=0 // loop_header_branch
    %15 = sbr.rel (%p13) target = $region8
  $region5: #{sebastian_conv_block2.1} parent=0 // loop_body
    %s17 = ssub.s32 %s12, 1
    %s18 = ssub.s32 %s12, 2
    %s19 = sadd.s32 %s12, 1
    %s20 = ssub.s32 %s12, %s19
    %p21 = scmp.eq.s32.totalorder %s20, 0
    %s23 = sadd.s32 %s22, 1
    %s24 = scalar_select %p21, %s22, %s23
    %p27 = pneg %p21
    %p28 = scmp.eq.s32.totalorder %s12, 1
    %p29 = por %p27, %p28
    %p30 = scmp.ne.s32.totalorder %s22, %s25
    %p31 = scmp.eq.s32.totalorder %s12, 0
    %p32 = por %p30, %p31
    %p33 = scmp.ne.s32.totalorder %s22, %s25
    %p34 = scmp.eq.s32.totalorder %s17, 1
    %p35 = por %p33, %p34
    %p36 = scmp.ne.s32.totalorder %s25, %s26
    %p37 = scmp.eq.s32.totalorder %s17, 0
    %p38 = por %p36, %p37
    %p39 = scmp.ne.s32.totalorder %s25, %s26
    %p40 = scmp.eq.s32.totalorder %s18, 1
    %p41 = por %p39, %p40
    %p43 = scmp.ne.s32.totalorder %s26, %s42
    %p44 = scmp.eq.s32.totalorder %s18, 0
    %p45 = por %p43, %p44
    %s47 = sadd.s32 %s46, 1
    %p50 = scmp.eq.s32.totalorder %s12, 1
    %p51 = scmp.ne.s32.totalorder %s46, %s48
    %p52 = scmp.eq.s32.totalorder %s12, 0
    %p53 = por %p51, %p52
    %p54 = scmp.ne.s32.totalorder %s46, %s48
    %p55 = scmp.eq.s32.totalorder %s17, 1
    %p56 = por %p54, %p55
    %p57 = scmp.ne.s32.totalorder %s48, %s49
    %p58 = scmp.eq.s32.totalorder %s17, 0
    %p59 = por %p57, %p58
    %p60 = scmp.ne.s32.totalorder %s48, %s49
    %p61 = scmp.eq.s32.totalorder %s18, 1
    %p62 = por %p60, %p61
    %p64 = scmp.ne.s32.totalorder %s49, %s63
    %p65 = scmp.eq.s32.totalorder %s18, 0
    %p66 = por %p64, %p65
    %s68 = sadd.s32 %s67, 1
    %p71 = scmp.eq.s32.totalorder %s12, 1
    %p72 = scmp.ne.s32.totalorder %s67, %s69
    %p73 = scmp.eq.s32.totalorder %s12, 0
    %p74 = por %p72, %p73
    %p75 = scmp.ne.s32.totalorder %s67, %s69
    %p76 = scmp.eq.s32.totalorder %s17, 1
    %p77 = por %p75, %p76
    %p78 = scmp.ne.s32.totalorder %s69, %s70
    %p79 = scmp.eq.s32.totalorder %s17, 0
    %p80 = por %p78, %p79
    %p81 = scmp.ne.s32.totalorder %s69, %s70
    %p82 = scmp.eq.s32.totalorder %s18, 1
    %p83 = por %p81, %p82
    %p85 = scmp.ne.s32.totalorder %s70, %s84
    %p86 = scmp.eq.s32.totalorder %s18, 0
    %p87 = por %p85, %p86
    %s89 = sadd.s32 %s88, 1
    %p92 = scmp.eq.s32.totalorder %s12, 1
    %p93 = scmp.ne.s32.totalorder %s88, %s90
    %p94 = scmp.eq.s32.totalorder %s12, 0
    %p95 = por %p93, %p94
    %p96 = scmp.ne.s32.totalorder %s88, %s90
    %p97 = scmp.eq.s32.totalorder %s17, 1
    %p98 = por %p96, %p97
    %p99 = scmp.ne.s32.totalorder %s90, %s91
    %p100 = scmp.eq.s32.totalorder %s17, 0
    %p101 = por %p99, %p100
    %p102 = scmp.ne.s32.totalorder %s90, %s91
    %p103 = scmp.eq.s32.totalorder %s18, 1
    %p104 = por %p102, %p103
    %p106 = scmp.ne.s32.totalorder %s91, %s105
    %p107 = scmp.eq.s32.totalorder %s18, 0
    %p108 = por %p106, %p107
    %s110 = sadd.s32 %s109, 1
    %p113 = scmp.eq.s32.totalorder %s12, 1
    %p114 = scmp.ne.s32.totalorder %s109, %s111
    %p115 = scmp.eq.s32.totalorder %s12, 0
    %p116 = por %p114, %p115
    %p117 = scmp.ne.s32.totalorder %s109, %s111
    %p118 = scmp.eq.s32.totalorder %s17, 1
    %p119 = por %p117, %p118
    %p120 = scmp.ne.s32.totalorder %s111, %s112
    %p121 = scmp.eq.s32.totalorder %s17, 0
    %p122 = por %p120, %p121
    %p123 = scmp.ne.s32.totalorder %s111, %s112
    %p124 = scmp.eq.s32.totalorder %s18, 1
    %p125 = por %p123, %p124
    %p127 = scmp.ne.s32.totalorder %s112, %s126
    %p128 = scmp.eq.s32.totalorder %s18, 0
    %p129 = por %p127, %p128
    %s131 = sadd.s32 %s130, 1
    %p134 = scmp.eq.s32.totalorder %s12, 1
    %p135 = scmp.ne.s32.totalorder %s130, %s132
    %p136 = scmp.eq.s32.totalorder %s12, 0
    %p137 = por %p135, %p136
    %p138 = scmp.ne.s32.totalorder %s130, %s132
    %p139 = scmp.eq.s32.totalorder %s17, 1
    %p140 = por %p138, %p139
    %p141 = scmp.ne.s32.totalorder %s132, %s133
    %p142 = scmp.eq.s32.totalorder %s17, 0
    %p143 = por %p141, %p142
    %p144 = scmp.ne.s32.totalorder %s132, %s133
    %p145 = scmp.eq.s32.totalorder %s18, 1
    %p146 = por %p144, %p145
    %p148 = scmp.ne.s32.totalorder %s133, %s147
    %p149 = scmp.eq.s32.totalorder %s18, 0
    %p150 = por %p148, %p149
    %s151 = ssub.s32 %s12, %s19
    %p152 = scmp.eq.s32.totalorder %s151, 0
    %s154 = sadd.s32 %s153, 1
    %s155 = scalar_select %p152, %s153, %s154
    %p158 = pneg %p152
    %p159 = scmp.eq.s32.totalorder %s12, 1
    %p160 = por %p158, %p159
    %p161 = scmp.ne.s32.totalorder %s153, %s156
    %p162 = scmp.eq.s32.totalorder %s12, 0
    %p163 = por %p161, %p162
    %p164 = scmp.ne.s32.totalorder %s153, %s156
    %p165 = scmp.eq.s32.totalorder %s17, 1
    %p166 = por %p164, %p165
    %p167 = scmp.ne.s32.totalorder %s156, %s157
    %p168 = scmp.eq.s32.totalorder %s17, 0
    %p169 = por %p167, %p168
    %p170 = scmp.ne.s32.totalorder %s156, %s157
    %p171 = scmp.eq.s32.totalorder %s18, 1
    %p172 = por %p170, %p171
    %p174 = scmp.ne.s32.totalorder %s157, %s173
    %p175 = scmp.eq.s32.totalorder %s18, 0
    %p176 = por %p174, %p175
    %p177 = scmp.le.s32.totalorder 1, %s12
    %p178 = scmp.lt.s32.totalorder %s12, 3
    %p179 = pnand %p177, %p178
    %p180 = pneg %p179
    // Predicated region
    $region9: #{sebastian_conv_block2.1} parent=5 // pred_check
      _
    $region10: #{sebastian_conv_block2.1} parent=5 // pred_check_branch
      %182 = sbr.rel (%p179) target = $region12
    $region11: #{sebastian_conv_block2.1} parent=5 // pred_region
      %s183 = ssub.s32 %s12, 1
      // Predicated region
      $region13: #{sebastian_conv_block2.1} parent=11 // pred_check
        %p184 = pneg %p59
      $region14: #{sebastian_conv_block2.1} parent=11 // pred_check_branch
        %186 = sbr.rel (%p184) target = $region16
      $region15: #{sebastian_conv_block2.1} parent=11 // pred_region
        _
      $region16: #{sebastian_conv_block2.1} parent=11 // pred_fallthru
        _
      // Predicated region
      $region17: #{sebastian_conv_block2.1} parent=11 // pred_check
        %p187 = pneg %p80
      $region18: #{sebastian_conv_block2.1} parent=11 // pred_check_branch
        %189 = sbr.rel (%p187) target = $region20
      $region19: #{sebastian_conv_block2.1} parent=11 // pred_region
        _
      $region20: #{sebastian_conv_block2.1} parent=11 // pred_fallthru
        _
      // Predicated region
      $region21: #{sebastian_conv_block2.1} parent=11 // pred_check
        %p190 = pneg %p101
      $region22: #{sebastian_conv_block2.1} parent=11 // pred_check_branch
        %192 = sbr.rel (%p190) target = $region24
      $region23: #{sebastian_conv_block2.1} parent=11 // pred_region
        _
      $region24: #{sebastian_conv_block2.1} parent=11 // pred_fallthru
        _
      // Predicated region
      $region25: #{sebastian_conv_block2.1} parent=11 // pred_check
        %p193 = pneg %p122
      $region26: #{sebastian_conv_block2.1} parent=11 // pred_check_branch
        %195 = sbr.rel (%p193) target = $region28
      $region27: #{sebastian_conv_block2.1} parent=11 // pred_region
        _
      $region28: #{sebastian_conv_block2.1} parent=11 // pred_fallthru
        _
      // Predicated region
      $region29: #{sebastian_conv_block2.1} parent=11 // pred_check
        %p196 = pneg %p143
      $region30: #{sebastian_conv_block2.1} parent=11 // pred_check_branch
        %198 = sbr.rel (%p196) target = $region32
      $region31: #{sebastian_conv_block2.1} parent=11 // pred_region
        _
      $region32: #{sebastian_conv_block2.1} parent=11 // pred_fallthru
        _
    $region12: #{sebastian_conv_block2.1} parent=5 // pred_fallthru
      _
    %p199 = scmp.lt.s32.totalorder %s12, 2
    // Predicated region
    $region33: #{sebastian_conv_block2.1} parent=5 // pred_check
      %p200 = pneg %p199
    $region34: #{sebastian_conv_block2.1} parent=5 // pred_check_branch
      %202 = sbr.rel (%p200) target = $region36
    $region35: #{sebastian_conv_block2.1} parent=5 // pred_region
      // Predicated region
      $region37: #{sebastian_conv_block2.1} parent=35 // pred_check
        %p203 = pneg %p32
      $region38: #{sebastian_conv_block2.1} parent=35 // pred_check_branch
        %205 = sbr.rel (%p203) target = $region40
      $region39: #{sebastian_conv_block2.1} parent=35 // pred_region
        %p206 = scmp.lt.s32.totalorder %s12, 1
        %s207 = scalar_select %p206, %s12, 1
        %s208 = smul.addr %s207, 3
        %s209 = smul.addr %s208, 4
        %s210 = scalar_lea.vmem %s0, %s209
      $region40: #{sebastian_conv_block2.1} parent=35 // pred_fallthru
        _
    $region36: #{sebastian_conv_block2.1} parent=5 // pred_fallthru
      _
    %p211 = scmp.le.s32.totalorder 1, %s12
    %p212 = scmp.lt.s32.totalorder %s12, 3
    %p213 = pnand %p211, %p212
    %p214 = pneg %p213
    // Predicated region
    $region41: #{sebastian_conv_block2.1} parent=5 // pred_check
      _
    $region42: #{sebastian_conv_block2.1} parent=5 // pred_check_branch
      %216 = sbr.rel (%p213) target = $region44
    $region43: #{sebastian_conv_block2.1} parent=5 // pred_region
      %s217 = ssub.s32 %s12, 1
      %p218 = scmp.lt.s32.totalorder %s17, 1
      %s219 = scalar_select %p218, %s17, 1
      %s220 = smul.addr %s219, 3
      %s221 = smul.addr %s220, 4
      %s222 = scalar_lea.vmem %s0, %s221
      %p223 = pneg %p38
      %p224 = pneg %p35
      %p225 = pneg %p59
      %p226 = pneg %p56
      %p227 = pneg %p80
      %p228 = pneg %p77
      %p229 = pneg %p101
      %p230 = pneg %p98
      %p231 = pneg %p122
      %p232 = pneg %p119
      %p233 = pneg %p143
      %p234 = pneg %p140
      %p235 = pneg %p169
      %p236 = pneg %p166
      %p237 = scmp.lt.s32.totalorder %s17, 1
      %s238 = scalar_select %p237, %s17, 1
      %s239 = smul.addr %s238, 3
      %s240 = smul.addr %s239, 4
      %s241 = scalar_lea.vmem %s6, %s240
      %p242 = scmp.lt.s32.totalorder %s17, 1
      %s243 = scalar_select %p242, %s17, 1
      %s244 = smul.addr %s243, 3
      %s245 = smul.addr %s244, 4
      %s246 = scalar_lea.vmem %s0, %s245
      %p247 = scmp.lt.s32.totalorder %s17, 1
      %s248 = scalar_select %p247, %s17, 1
      %s249 = smul.addr %s248, 3
      %s250 = smul.addr %s249, 4
      %s251 = scalar_lea.vmem %s6, %s250
      %v252 = vld [vmem:[%s246] sm:$0xff]
      %v253 = vld [vmem:[%s246 + $0x8] sm:$0xf]
      %v255 = vcombine.high %v252, %v252
      %257 = vst [vmem:[#allocation2] sm:$0xf] %v252
      %258 = vst [vmem:[#allocation2 + $0x8] sm:$0xf] %v255
      %vm259 = vcmask 519168
      %260 = vst.msk [vmem:[#allocation2 + $0x10] sm:$0xf] %vm259, %v253
      %v261 = vld [vmem:[%s246] sm:$0xff]
      %v262 = vld [vmem:[%s246 + $0x8] sm:$0xf]
      %v265 = vcombine.low %v261, %v261
      %v266 = vcombine.low %v262, %v262
      %267 = vrot.lane.b32.xlu0 %v265, 127
      %v268 = vpop.permute.xlu0 %267
      %269 = vrot.lane.b32.xlu0 %v261, 127
      %v270 = vpop.permute.xlu0 %269
      %271 = vrot.lane.b32.xlu0 %v266, 127
      %v272 = vpop.permute.xlu0 %271
      %vm273 = vcmask 1039360
      %v274 = vsel %vm273, %v268, %v270
      %v275 = vsel %vm273, %v270, %v272
      %279 = vst [vmem:[#allocation2] sm:$0xf0] %v274
      %280 = vst [vmem:[#allocation2 + $0x8] sm:$0xf0] %v275
      %vm281 = vcmask 523268
      %282 = vst.msk [vmem:[#allocation2 + $0x10] sm:$0xf0] %vm281, %v272
      %v283 = vld [vmem:[%s246] sm:$0xff]
      %v284 = vld [vmem:[%s246 + $0x8] sm:$0xf]
      %v287 = vcombine.high %v283, %v283
      %288 = vrot.lane.b32.xlu0 %v283, 126
      %v289 = vpop.permute.xlu0 %288
      %290 = vrot.lane.b32.xlu0 %v287, 126
      %v291 = vpop.permute.xlu0 %290
      %292 = vrot.lane.b32.xlu0 %v284, 126
      %v293 = vpop.permute.xlu0 %292
      %vm294 = vcmask 1031168
      %v295 = vsel %vm294, %v289, %v291
      %v296 = vsel %vm294, %v291, %v293
      %300 = vst [vmem:[#allocation2 + $0x18] sm:$0xf] %v295
      %301 = vst [vmem:[#allocation2 + $0x20] sm:$0xf] %v296
      %302 = vst.msk [vmem:[#allocation2 + $0x28] sm:$0xf] %vm259, %v293
      %v303 = vld [vmem:[%s246] sm:$0xff]
      %v304 = vld [vmem:[%s246 + $0x8] sm:$0xf]
      %v307 = vcombine.low %v303, %v303
      %v308 = vcombine.low %v304, %v304
      %309 = vrot.lane.b32.xlu0 %v307, 125
      %v310 = vpop.permute.xlu0 %309
      %311 = vrot.lane.b32.xlu0 %v303, 125
      %v312 = vpop.permute.xlu0 %311
      %313 = vrot.lane.b32.xlu0 %v308, 125
      %v314 = vpop.permute.xlu0 %313
      %vm315 = vcmask 1022976
      %v316 = vsel %vm315, %v310, %v312
      %v317 = vsel %vm315, %v312, %v314
      %321 = vst [vmem:[#allocation2 + $0x18] sm:$0xf0] %v316
      %322 = vst [vmem:[#allocation2 + $0x20] sm:$0xf0] %v317
      %323 = vst.msk [vmem:[#allocation2 + $0x28] sm:$0xf0] %vm281, %v314
      %v324 = vld [vmem:[%s246] sm:$0xff]
      %v325 = vld [vmem:[%s246 + $0x8] sm:$0xf]
      %v328 = vcombine.high %v324, %v324
      %329 = vrot.lane.b32.xlu0 %v324, 124
      %v330 = vpop.permute.xlu0 %329
      %331 = vrot.lane.b32.xlu0 %v328, 124
      %v332 = vpop.permute.xlu0 %331
      %333 = vrot.lane.b32.xlu0 %v325, 124
      %v334 = vpop.permute.xlu0 %333
      %vm335 = vcmask 1014784
      %v336 = vsel %vm335, %v330, %v332
      %v337 = vsel %vm335, %v332, %v334
      %341 = vst [vmem:[#allocation2 + $0x30] sm:$0xf] %v336
      %342 = vst [vmem:[#allocation2 + $0x38] sm:$0xf] %v337
      %343 = vst.msk [vmem:[#allocation2 + $0x40] sm:$0xf] %vm259, %v334
      %v344 = vld [vmem:[%s246] sm:$0xff]
      %v345 = vld [vmem:[%s246 + $0x8] sm:$0xf]
      %v348 = vcombine.low %v344, %v344
      %v349 = vcombine.low %v345, %v345
      %350 = vrot.lane.b32.xlu0 %v348, 108
      %v351 = vpop.permute.xlu0 %350
      %352 = vrot.lane.b32.xlu0 %v344, 108
      %v353 = vpop.permute.xlu0 %352
      %354 = vrot.lane.b32.xlu0 %v349, 108
      %v355 = vpop.permute.xlu0 %354
      %vm356 = vcmask 883712
      %v357 = vsel %vm356, %v351, %v353
      %v358 = vsel %vm356, %v353, %v355
      %362 = vst [vmem:[#allocation2 + $0x30] sm:$0xf0] %v357
      %363 = vst [vmem:[#allocation2 + $0x38] sm:$0xf0] %v358
      %364 = vst.msk [vmem:[#allocation2 + $0x40] sm:$0xf0] %vm281, %v355
      %v365 = vld [vmem:[%s246] sm:$0xff]
      %v366 = vld [vmem:[%s246 + $0x8] sm:$0xf]
      %v369 = vcombine.high %v365, %v365
      %370 = vrot.lane.b32.xlu0 %v365, 107
      %v371 = vpop.permute.xlu0 %370
      %372 = vrot.lane.b32.xlu0 %v369, 107
      %v373 = vpop.permute.xlu0 %372
      %374 = vrot.lane.b32.xlu0 %v366, 107
      %v375 = vpop.permute.xlu0 %374
      %vm376 = vcmask 875520
      %v377 = vsel %vm376, %v371, %v373
      %v378 = vsel %vm376, %v373, %v375
      %382 = vst [vmem:[#allocation2 + $0x48] sm:$0xf] %v377
      %383 = vst [vmem:[#allocation2 + $0x50] sm:$0xf] %v378
      %384 = vst.msk [vmem:[#allocation2 + $0x58] sm:$0xf] %vm259, %v375
      %v385 = vld [vmem:[%s246] sm:$0xff]
      %v386 = vld [vmem:[%s246 + $0x8] sm:$0xf]
      %v389 = vcombine.low %v385, %v385
      %v390 = vcombine.low %v386, %v386
      %391 = vrot.lane.b32.xlu0 %v389, 106
      %v392 = vpop.permute.xlu0 %391
      %393 = vrot.lane.b32.xlu0 %v385, 106
      %v394 = vpop.permute.xlu0 %393
      %395 = vrot.lane.b32.xlu0 %v390, 106
      %v396 = vpop.permute.xlu0 %395
      %vm397 = vcmask 867328
      %v398 = vsel %vm397, %v392, %v394
      %v399 = vsel %vm397, %v394, %v396
      %403 = vst [vmem:[#allocation2 + $0x48] sm:$0xf0] %v398
      %404 = vst [vmem:[#allocation2 + $0x50] sm:$0xf0] %v399
      %405 = vst.msk [vmem:[#allocation2 + $0x58] sm:$0xf0] %vm281, %v396
      %v406 = vld [vmem:[%s246] sm:$0xff]
      %v407 = vld [vmem:[%s246 + $0x8] sm:$0xf]
      %v410 = vcombine.high %v406, %v406
      %411 = vrot.lane.b32.xlu0 %v406, 105
      %v412 = vpop.permute.xlu0 %411
      %413 = vrot.lane.b32.xlu0 %v410, 105
      %v414 = vpop.permute.xlu0 %413
      %415 = vrot.lane.b32.xlu0 %v407, 105
      %v416 = vpop.permute.xlu0 %415
      %vm417 = vcmask 859136
      %v418 = vsel %vm417, %v412, %v414
      %v419 = vsel %vm417, %v414, %v416
      %423 = vst [vmem:[#allocation2 + $0x60] sm:$0xf] %v418
      %424 = vst [vmem:[#allocation2 + $0x68] sm:$0xf] %v419
      %425 = vst.msk [vmem:[#allocation2 + $0x70] sm:$0xf] %vm259, %v416
      %v426 = vld [vmem:[%s246] sm:$0xff]
      %v427 = vld [vmem:[%s246 + $0x8] sm:$0xf]
      %v430 = vcombine.low %v426, %v426
      %v431 = vcombine.low %v427, %v427
      %432 = vrot.lane.b32.xlu0 %v430, 104
      %v433 = vpop.permute.xlu0 %432
      %434 = vrot.lane.b32.xlu0 %v426, 104
      %v435 = vpop.permute.xlu0 %434
      %436 = vrot.lane.b32.xlu0 %v431, 104
      %v437 = vpop.permute.xlu0 %436
      %vm438 = vcmask 850944
      %v439 = vsel %vm438, %v433, %v435
      %v440 = vsel %vm438, %v435, %v437
      %444 = vst [vmem:[#allocation2 + $0x60] sm:$0xf0] %v439
      %445 = vst [vmem:[#allocation2 + $0x68] sm:$0xf0] %v440
      %446 = vst.msk [vmem:[#allocation2 + $0x70] sm:$0xf0] %vm281, %v437
      %v447 = vld [vmem:[%s246] sm:$0xff]
      %v448 = vld [vmem:[%s246 + $0x8] sm:$0xf]
      %v451 = vcombine.high %v447, %v447
      %452 = vrot.lane.b32.xlu0 %v447, 88
      %v453 = vpop.permute.xlu0 %452
      %454 = vrot.lane.b32.xlu0 %v451, 88
      %v455 = vpop.permute.xlu0 %454
      %456 = vrot.lane.b32.xlu0 %v448, 88
      %v457 = vpop.permute.xlu0 %456
      %vm458 = vcmask 719872
      %v459 = vsel %vm458, %v453, %v455
      %v460 = vsel %vm458, %v455, %v457
      %464 = vst [vmem:[#allocation2 + $0x78] sm:$0xf] %v459
      %465 = vst [vmem:[#allocation2 + $0x80] sm:$0xf] %v460
      %466 = vst.msk [vmem:[#allocation2 + $0x88] sm:$0xf] %vm259, %v457
      %v467 = vld [vmem:[%s246] sm:$0xff]
      %v468 = vld [vmem:[%s246 + $0x8] sm:$0xf]
      %v471 = vcombine.low %v467, %v467
      %v472 = vcombine.low %v468, %v468
      %473 = vrot.lane.b32.xlu0 %v471, 87
      %v474 = vpop.permute.xlu0 %473
      %475 = vrot.lane.b32.xlu0 %v467, 87
      %v476 = vpop.permute.xlu0 %475
      %477 = vrot.lane.b32.xlu0 %v472, 87
      %v478 = vpop.permute.xlu0 %477
      %vm479 = vcmask 711680
      %v480 = vsel %vm479, %v474, %v476
      %v481 = vsel %vm479, %v476, %v478
      %485 = vst [vmem:[#allocation2 + $0x78] sm:$0xf0] %v480
      %486 = vst [vmem:[#allocation2 + $0x80] sm:$0xf0] %v481
      %487 = vst.msk [vmem:[#allocation2 + $0x88] sm:$0xf0] %vm281, %v478
      %v488 = vld [vmem:[%s246] sm:$0xff]
      %v489 = vld [vmem:[%s246 + $0x8] sm:$0xf]
      %v492 = vcombine.high %v488, %v488
      %493 = vrot.lane.b32.xlu0 %v488, 86
      %v494 = vpop.permute.xlu0 %493
      %495 = vrot.lane.b32.xlu0 %v492, 86
      %v496 = vpop.permute.xlu0 %495
      %497 = vrot.lane.b32.xlu0 %v489, 86
      %v498 = vpop.permute.xlu0 %497
      %vm499 = vcmask 703488
      %v500 = vsel %vm499, %v494, %v496
      %v501 = vsel %vm499, %v496, %v498
      %505 = vst [vmem:[#allocation2 + $0x90] sm:$0xf] %v500
      %506 = vst [vmem:[#allocation2 + $0x98] sm:$0xf] %v501
      %507 = vst.msk [vmem:[#allocation2 + $0xa0] sm:$0xf] %vm259, %v498
      %v508 = vld [vmem:[%s246] sm:$0xff]
      %v509 = vld [vmem:[%s246 + $0x8] sm:$0xf]
      %v512 = vcombine.low %v508, %v508
      %v513 = vcombine.low %v509, %v509
      %514 = vrot.lane.b32.xlu0 %v512, 85
      %v515 = vpop.permute.xlu0 %514
      %516 = vrot.lane.b32.xlu0 %v508, 85
      %v517 = vpop.permute.xlu0 %516
      %518 = vrot.lane.b32.xlu0 %v513, 85
      %v519 = vpop.permute.xlu0 %518
      %vm520 = vcmask 695296
      %v521 = vsel %vm520, %v515, %v517
      %v522 = vsel %vm520, %v517, %v519
      %526 = vst [vmem:[#allocation2 + $0x90] sm:$0xf0] %v521
      %527 = vst [vmem:[#allocation2 + $0x98] sm:$0xf0] %v522
      %528 = vst.msk [vmem:[#allocation2 + $0xa0] sm:$0xf0] %vm281, %v519
      %v529 = vld [vmem:[%s246] sm:$0xff]
      %v530 = vld [vmem:[%s246 + $0x8] sm:$0xf]
      %v533 = vcombine.high %v529, %v529
      %534 = vrot.lane.b32.xlu0 %v529, 84
      %v535 = vpop.permute.xlu0 %534
      %536 = vrot.lane.b32.xlu0 %v533, 84
      %v537 = vpop.permute.xlu0 %536
      %538 = vrot.lane.b32.xlu0 %v530, 84
      %v539 = vpop.permute.xlu0 %538
      %vm540 = vcmask 687104
      %v541 = vsel %vm540, %v535, %v537
      %v542 = vsel %vm540, %v537, %v539
      %546 = vst [vmem:[#allocation2 + $0xa8] sm:$0xf] %v541
      %547 = vst [vmem:[#allocation2 + $0xb0] sm:$0xf] %v542
      %548 = vst.msk [vmem:[#allocation2 + $0xb8] sm:$0xf] %vm259, %v539
      %v549 = vld [vmem:[%s1] sm:$0xff]
      %v550 = vld [vmem:[#allocation2] sm:$0xff]
      %v551 = vld [vmem:[#allocation2 + $0x8] sm:$0xff]
      %v552 = vld [vmem:[#allocation2 + $0x10] sm:$0xff]
      %v553 = vld [vmem:[#allocation2 + $0x18] sm:$0xff]
      %v554 = vld [vmem:[#allocation2 + $0x20] sm:$0xff]
      %v555 = vld [vmem:[#allocation2 + $0x28] sm:$0xff]
      %v556 = vld [vmem:[#allocation2 + $0x30] sm:$0xff]
      %v557 = vld [vmem:[#allocation2 + $0x38] sm:$0xff]
      %v558 = vld [vmem:[#allocation2 + $0x40] sm:$0xff]
      %v559 = vld [vmem:[#allocation2 + $0x48] sm:$0xff]
      %v560 = vld [vmem:[#allocation2 + $0x50] sm:$0xff]
      %v561 = vld [vmem:[#allocation2 + $0x58] sm:$0xff]
      %v562 = vld [vmem:[#allocation2 + $0x60] sm:$0xff]
      %v563 = vld [vmem:[#allocation2 + $0x68] sm:$0xff]
      %v564 = vld [vmem:[#allocation2 + $0x70] sm:$0xff]
      %v565 = vld [vmem:[#allocation2 + $0x78] sm:$0xff]
      %v566 = vld [vmem:[#allocation2 + $0x80] sm:$0xff]
      %v567 = vld [vmem:[#allocation2 + $0x88] sm:$0xff]
      %v568 = vld [vmem:[#allocation2 + $0x90] sm:$0xff]
      %v569 = vld [vmem:[#allocation2 + $0x98] sm:$0xff]
      %v570 = vld [vmem:[#allocation2 + $0xa0] sm:$0xff]
      %v571 = vld [vmem:[#allocation2 + $0xa8] sm:$0xf]
      %v572 = vld [vmem:[#allocation2 + $0xb0] sm:$0xf]
      %v573 = vld [vmem:[#allocation2 + $0xb8] sm:$0xf]
      %v574 = vld [vmem:[%s2] sm:$0xff]
      %576 = vset.pattern.permute.xlu0 0
      %577 = vperm.xlu0 %576, %v574
      %v578 = vpop.permute.xlu0 %577
      %vm580 = vcmask 490496
      %v582 = vsel %vm580, %v549, 0
      %vm584 = vcmask 1043456
      %v586 = vsel %vm584, %v571, 0
      %v589 = vsel %vm584, %v572, 0
      %v592 = vsel %vm584, %v573, 0
      %594 = vmatprep.subr.mxu0 %v551
      %595 = vmatpush1.msra.mxu0 %v550
      %596 = vmatprep.subr.mxu0 %v554
      %597 = vmatpush1.msra.mxu0 %v553
      %598 = vmatprep.subr.mxu0 %v557
      %599 = vmatpush1.msra.mxu0 %v556
      %600 = vmatprep.subr.mxu0 %v560
      %601 = vmatpush1.msra.mxu0 %v559
      %602 = vmatprep.subr.mxu0 %v563
      %603 = vmatpush1.msra.mxu0 %v562
      %604 = vmatprep.subr.mxu0 %v566
      %605 = vmatpush1.msra.mxu0 %v565
      %606 = vmatprep.subr.mxu0 %v569
      %607 = vmatpush1.msra.mxu0 %v568
      %608 = vmatprep.subr.mxu0 %v589
      %609 = vmatpush1.msra.mxu0 %v586
      %610 = vmatprep.subr.mxu0 0.0
      %611 = vmatpush1.msra.mxu0 0.0
      %612 = vmatprep.subr.mxu0 0.0
      %613 = vmatpush1.msra.mxu0 0.0
      %614 = vmatprep.subr.mxu0 0.0
      %615 = vmatpush1.msra.mxu0 0.0
      %616 = vmatprep.subr.mxu0 0.0
      %617 = vmatpush1.msra.mxu0 0.0
      %618 = vmatprep.subr.mxu0 0.0
      %619 = vmatpush1.msra.mxu0 0.0
      %620 = vmatprep.subr.mxu0 0.0
      %621 = vmatpush1.msra.mxu0 0.0
      %622 = vmatprep.subr.mxu0 0.0
      %623 = vmatpush1.msra.mxu0 0.0
      %624 = vmatprep.subr.mxu0 0.0
      %625 = vmatpush1.msra.mxu0 0.0
      %626 = vmatprep.subr.mxu0 0.0
      %627 = vmatpush1.msra.mxu0 0.0
      %628 = vmatprep.subr.mxu0 0.0
      %629 = vmatpush1.msra.mxu0 0.0
      %630 = vmatprep.subr.mxu0 0.0
      %631 = vmatpush1.msra.mxu0 0.0
      %632 = vmatprep.subr.mxu0 0.0
      %633 = vmatpush1.msra.mxu0 0.0
      %634 = vmatprep.subr.mxu0 0.0
      %635 = vmatpush1.msra.mxu0 0.0
      %636 = vmatprep.subr.mxu0 0.0
      %637 = vmatpush1.msra.mxu0 0.0
      %638 = vmatprep.subr.mxu0 0.0
      %639 = vmatpush1.msra.mxu0 0.0
      %640 = vmatprep.subr.mxu0 0.0
      %641 = vmatpush1.msra.mxu0 0.0
      %642 = vmatprep.subr.mxu0 0.0
      %643 = vmatpush1.msra.mxu0 0.0
      %644 = vmatprep.subr.mxu0 0.0
      %645 = vmatpush1.msra.mxu0 0.0
      %646 = vmatprep.subr.mxu0 0.0
      %647 = vmatpush1.msra.mxu0 0.0
      %648 = vmatprep.subr.mxu0 0.0
      %649 = vmatpush1.msra.mxu0 0.0
      %650 = vmatprep.subr.mxu0 0.0
      %651 = vmatpush1.msra.mxu0 0.0
      %652 = vmatprep.subr.mxu0 0.0
      %653 = vmatpush1.msra.mxu0 0.0
      %654 = vmatprep.subr.mxu0 0.0
      %655 = vmatpush1.msra.mxu0 0.0
      %656 = vmatprep.subr.mxu0 0.0
      %657 = vmatpush1.msra.mxu0 0.0
      %658 = vmatprep.mubr.f32.mxu0 0.0
      %659 = vmatmul.mubr.f32.gmra.mrb[0].mxu0 %v582
      %v660 = vpop.f32.mrb[0].mxu0
      %v661 = vadd.f32 %v578, %v660
      %v662 = vpop.f32.mrb[0].mxu0
      %v663 = vadd.f32 %v578, %v662
      %664 = vdwg.mxu0
      %665 = vmatprep.subr.mxu0 0.0
      %666 = vmatpush1.msra.mxu0 %v552
      %667 = vmatprep.subr.mxu0 0.0
      %668 = vmatpush1.msra.mxu0 %v555
      %669 = vmatprep.subr.mxu0 0.0
      %670 = vmatpush1.msra.mxu0 %v558
      %671 = vmatprep.subr.mxu0 0.0
      %672 = vmatpush1.msra.mxu0 %v561
      %673 = vmatprep.subr.mxu0 0.0
      %674 = vmatpush1.msra.mxu0 %v564
      %675 = vmatprep.subr.mxu0 0.0
      %676 = vmatpush1.msra.mxu0 %v567
      %677 = vmatprep.subr.mxu0 0.0
      %678 = vmatpush1.msra.mxu0 %v570
      %679 = vmatprep.subr.mxu0 0.0
      %680 = vmatpush1.msra.mxu0 %v592
      %681 = vmatprep.subr.mxu0 0.0
      %682 = vmatpush1.msra.mxu0 0.0
      %683 = vmatprep.subr.mxu0 0.0
      %684 = vmatpush1.msra.mxu0 0.0
      %685 = vmatprep.subr.mxu0 0.0
      %686 = vmatpush1.msra.mxu0 0.0
      %687 = vmatprep.subr.mxu0 0.0
      %688 = vmatpush1.msra.mxu0 0.0
      %689 = vmatprep.subr.mxu0 0.0
      %690 = vmatpush1.msra.mxu0 0.0
      %691 = vmatprep.subr.mxu0 0.0
      %692 = vmatpush1.msra.mxu0 0.0
      %693 = vmatprep.subr.mxu0 0.0
      %694 = vmatpush1.msra.mxu0 0.0
      %695 = vmatprep.subr.mxu0 0.0
      %696 = vmatpush1.msra.mxu0 0.0
      %697 = vmatprep.subr.mxu0 0.0
      %698 = vmatpush1.msra.mxu0 0.0
      %699 = vmatprep.subr.mxu0 0.0
      %700 = vmatpush1.msra.mxu0 0.0
      %701 = vmatprep.subr.mxu0 0.0
      %702 = vmatpush1.msra.mxu0 0.0
      %703 = vmatprep.subr.mxu0 0.0
      %704 = vmatpush1.msra.mxu0 0.0
      %705 = vmatprep.subr.mxu0 0.0
      %706 = vmatpush1.msra.mxu0 0.0
      %707 = vmatprep.subr.mxu0 0.0
      %708 = vmatpush1.msra.mxu0 0.0
      %709 = vmatprep.subr.mxu0 0.0
      %710 = vmatpush1.msra.mxu0 0.0
      %711 = vmatprep.subr.mxu0 0.0
      %712 = vmatpush1.msra.mxu0 0.0
      %713 = vmatprep.subr.mxu0 0.0
      %714 = vmatpush1.msra.mxu0 0.0
      %715 = vmatprep.subr.mxu0 0.0
      %716 = vmatpush1.msra.mxu0 0.0
      %717 = vmatprep.subr.mxu0 0.0
      %718 = vmatpush1.msra.mxu0 0.0
      %719 = vmatprep.subr.mxu0 0.0
      %720 = vmatpush1.msra.mxu0 0.0
      %721 = vmatprep.subr.mxu0 0.0
      %722 = vmatpush1.msra.mxu0 0.0
      %723 = vmatprep.subr.mxu0 0.0
      %724 = vmatpush1.msra.mxu0 0.0
      %725 = vmatprep.subr.mxu0 0.0
      %726 = vmatpush1.msra.mxu0 0.0
      %727 = vmatprep.subr.mxu0 0.0
      %728 = vmatpush1.msra.mxu0 0.0
      %729 = vmatprep.mubr.f32.mxu0 0.0
      %730 = vmatmul.mubr.f32.gmra.mrb[0].mxu0 %v582
      %v731 = vpop.f32.mrb[0].mxu0
      %v732 = vadd.f32 %v578, %v731
      %v733 = vpop.f32.mrb[0].mxu0
      %734 = vdwg.mxu0
      %v735 = vxor.u32 %v661, 2147483648
      %v736 = vxor.u32 %v663, 2147483648
      %v737 = vxor.u32 %v732, 2147483648
      %v738 = vmul.f32 %v735, 1.442695
      %v739 = vpow.pop %v738
      %v740 = vmul.f32 %v736, 1.442695
      %v741 = vpow.pop %v740
      %v742 = vmul.f32 %v737, 1.442695
      %v743 = vpow.pop %v742
      %v744 = vadd.f32 %v739, 1.0
      %v745 = vadd.f32 %v741, 1.0
      %v746 = vadd.f32 %v743, 1.0
      %v747 = vrcp.pop %v744
      %v748 = vmul.f32 1.0, %v747
      %v749 = vrcp.pop %v745
      %v750 = vmul.f32 1.0, %v749
      %v751 = vrcp.pop %v746
      %v752 = vmul.f32 1.0, %v751
      %v753 = vmul.f32 %v661, %v748
      %v754 = vmul.f32 %v663, %v750
      %v755 = vmul.f32 %v732, %v752
      %v756 = vld [vmem:[%s5] sm:$0x7]
      %v758 = vlaneseq
      %v759 = vshrl.u32 %v758, 7
      %v760 = vsub.s32 0, %v759
      %v761 = vrot.slane %v756, %v760
      %v762 = vlaneseq
      %v763 = vshrl.u32 %v762, 7
      %v764 = vsub.s32 1, %v763
      %v765 = vrot.slane %v756, %v764
      %v766 = vlaneseq
      %v767 = vshrl.u32 %v766, 7
      %v768 = vsub.s32 2, %v767
      %v769 = vrot.slane %v756, %v768
      %v773 = vmul.f32 %v753, %v761
      %v774 = vmul.f32 %v754, %v765
      %v775 = vmul.f32 %v755, %v769
      %vm776 = vcmask 179200
      %777 = vst.msk [vmem:[#allocation3] sm:$0xff] %vm776, 0.0
      %vm778 = vcmask 884400
      %779 = vst.msk [vmem:[#allocation3 + $0x10] sm:$0xff] %vm778, 0.0
      %783 = vrot.lane.b32.xlu0 %v773, 22
      %v784 = vpop.permute.xlu0 %783
      %785 = vrot.lane.b32.xlu0 %v774, 22
      %v786 = vpop.permute.xlu0 %785
      %787 = vrot.lane.b32.xlu0 %v775, 22
      %v788 = vpop.permute.xlu0 %787
      %v789 = vsel %vm776, %v784, %v786
      %v790 = vsel %vm776, %v786, %v788
      %vm794 = vcmask 1047728
      %795 = vst.msk [vmem:[#allocation3] sm:$0xff] %vm794, %v784
      %796 = vst [vmem:[#allocation3 + $0x8] sm:$0xff] %v789
      %797 = vst.msk [vmem:[#allocation3 + $0x10] sm:$0xff] %vm499, %v790
      %v798 = vld [vmem:[#allocation3] sm:$0xff]
      %v799 = vld [vmem:[#allocation3 + $0x8] sm:$0xff]
      %v800 = vld [vmem:[#allocation3 + $0x10] sm:$0xff]
      %801 = vst [vmem:[#allocation4] sm:$0xff] %v798
      %802 = vst [vmem:[#allocation4 + $0x8] sm:$0xff] %v799
      %vm803 = vcmask 523264
      %804 = vst.msk [vmem:[#allocation4 + $0x10] sm:$0xff] %vm803, %v800
      %v805 = vld [vmem:[#allocation3] sm:$0xff]
      %v806 = vld [vmem:[#allocation3 + $0x8] sm:$0xff]
      %v807 = vld [vmem:[#allocation3 + $0x10] sm:$0xff]
      %811 = vrot.lane.b32.xlu0 %v805, 127
      %v812 = vpop.permute.xlu0 %811
      %813 = vrot.lane.b32.xlu0 %v806, 127
      %v814 = vpop.permute.xlu0 %813
      %815 = vrot.lane.b32.xlu0 %v807, 127
      %v816 = vpop.permute.xlu0 %815
      %v817 = vsel %vm273, %v812, %v814
      %v818 = vsel %vm273, %v814, %v816
      %822 = vst [vmem:[#allocation4 + $0x18] sm:$0xff] %v817
      %823 = vst [vmem:[#allocation4 + $0x20] sm:$0xff] %v818
      %824 = vst.msk [vmem:[#allocation4 + $0x28] sm:$0xff] %vm803, %v816
      %v825 = vld [vmem:[#allocation3] sm:$0xff]
      %v826 = vld [vmem:[#allocation3 + $0x8] sm:$0xff]
      %v827 = vld [vmem:[#allocation3 + $0x10] sm:$0xff]
      %831 = vrot.lane.b32.xlu0 %v825, 126
      %v832 = vpop.permute.xlu0 %831
      %833 = vrot.lane.b32.xlu0 %v826, 126
      %v834 = vpop.permute.xlu0 %833
      %835 = vrot.lane.b32.xlu0 %v827, 126
      %v836 = vpop.permute.xlu0 %835
      %v837 = vsel %vm294, %v832, %v834
      %v838 = vsel %vm294, %v834, %v836
      %842 = vst [vmem:[#allocation4 + $0x30] sm:$0xff] %v837
      %843 = vst [vmem:[#allocation4 + $0x38] sm:$0xff] %v838
      %844 = vst.msk [vmem:[#allocation4 + $0x40] sm:$0xff] %vm803, %v836
      %v845 = vld [vmem:[#allocation3] sm:$0xff]
      %v846 = vld [vmem:[#allocation3 + $0x8] sm:$0xff]
      %v847 = vld [vmem:[#allocation3 + $0x10] sm:$0xff]
      %851 = vrot.lane.b32.xlu0 %v845, 125
      %v852 = vpop.permute.xlu0 %851
      %853 = vrot.lane.b32.xlu0 %v846, 125
      %v854 = vpop.permute.xlu0 %853
      %855 = vrot.lane.b32.xlu0 %v847, 125
      %v856 = vpop.permute.xlu0 %855
      %v857 = vsel %vm315, %v852, %v854
      %v858 = vsel %vm315, %v854, %v856
      %862 = vst [vmem:[#allocation4 + $0x48] sm:$0xff] %v857
      %863 = vst [vmem:[#allocation4 + $0x50] sm:$0xff] %v858
      %864 = vst.msk [vmem:[#allocation4 + $0x58] sm:$0xff] %vm803, %v856
      %v865 = vld [vmem:[#allocation3] sm:$0xff]
      %v866 = vld [vmem:[#allocation3 + $0x8] sm:$0xff]
      %v867 = vld [vmem:[#allocation3 + $0x10] sm:$0xff]
      %871 = vrot.lane.b32.xlu0 %v865, 124
      %v872 = vpop.permute.xlu0 %871
      %873 = vrot.lane.b32.xlu0 %v866, 124
      %v874 = vpop.permute.xlu0 %873
      %875 = vrot.lane.b32.xlu0 %v867, 124
      %v876 = vpop.permute.xlu0 %875
      %v877 = vsel %vm335, %v872, %v874
      %v878 = vsel %vm335, %v874, %v876
      %882 = vst [vmem:[#allocation4 + $0x60] sm:$0xff] %v877
      %883 = vst [vmem:[#allocation4 + $0x68] sm:$0xff] %v878
      %884 = vst.msk [vmem:[#allocation4 + $0x70] sm:$0xff] %vm803, %v876
      %v885 = vld [vmem:[#allocation3] sm:$0xff]
      %v886 = vld [vmem:[#allocation3 + $0x8] sm:$0xff]
      %v887 = vld [vmem:[#allocation3 + $0x10] sm:$0xff]
      %891 = vrot.lane.b32.xlu0 %v885, 108
      %v892 = vpop.permute.xlu0 %891
      %893 = vrot.lane.b32.xlu0 %v886, 108
      %v894 = vpop.permute.xlu0 %893
      %895 = vrot.lane.b32.xlu0 %v887, 108
      %v896 = vpop.permute.xlu0 %895
      %v897 = vsel %vm356, %v892, %v894
      %v898 = vsel %vm356, %v894, %v896
      %902 = vst [vmem:[#allocation4 + $0x78] sm:$0xff] %v897
      %903 = vst [vmem:[#allocation4 + $0x80] sm:$0xff] %v898
      %904 = vst.msk [vmem:[#allocation4 + $0x88] sm:$0xff] %vm803, %v896
      %v905 = vld [vmem:[#allocation3] sm:$0xff]
      %v906 = vld [vmem:[#allocation3 + $0x8] sm:$0xff]
      %v907 = vld [vmem:[#allocation3 + $0x10] sm:$0xff]
      %911 = vrot.lane.b32.xlu0 %v905, 107
      %v912 = vpop.permute.xlu0 %911
      %913 = vrot.lane.b32.xlu0 %v906, 107
      %v914 = vpop.permute.xlu0 %913
      %915 = vrot.lane.b32.xlu0 %v907, 107
      %v916 = vpop.permute.xlu0 %915
      %v917 = vsel %vm376, %v912, %v914
      %v918 = vsel %vm376, %v914, %v916
      %922 = vst [vmem:[#allocation4 + $0x90] sm:$0xff] %v917
      %923 = vst [vmem:[#allocation4 + $0x98] sm:$0xff] %v918
      %924 = vst.msk [vmem:[#allocation4 + $0xa0] sm:$0xff] %vm803, %v916
      %v925 = vld [vmem:[#allocation3] sm:$0xff]
      %v926 = vld [vmem:[#allocation3 + $0x8] sm:$0xff]
      %v927 = vld [vmem:[#allocation3 + $0x10] sm:$0xff]
      %931 = vrot.lane.b32.xlu0 %v925, 106
      %v932 = vpop.permute.xlu0 %931
      %933 = vrot.lane.b32.xlu0 %v926, 106
      %v934 = vpop.permute.xlu0 %933
      %935 = vrot.lane.b32.xlu0 %v927, 106
      %v936 = vpop.permute.xlu0 %935
      %v937 = vsel %vm397, %v932, %v934
      %v938 = vsel %vm397, %v934, %v936
      %942 = vst [vmem:[#allocation4 + $0xa8] sm:$0xff] %v937
      %943 = vst [vmem:[#allocation4 + $0xb0] sm:$0xff] %v938
      %944 = vst.msk [vmem:[#allocation4 + $0xb8] sm:$0xff] %vm803, %v936
      %v945 = vld [vmem:[#allocation3] sm:$0xff]
      %v946 = vld [vmem:[#allocation3 + $0x8] sm:$0xff]
      %v947 = vld [vmem:[#allocation3 + $0x10] sm:$0xff]
      %951 = vrot.lane.b32.xlu0 %v945, 105
      %v952 = vpop.permute.xlu0 %951
      %953 = vrot.lane.b32.xlu0 %v946, 105
      %v954 = vpop.permute.xlu0 %953
      %955 = vrot.lane.b32.xlu0 %v947, 105
      %v956 = vpop.permute.xlu0 %955
      %v957 = vsel %vm417, %v952, %v954
      %v958 = vsel %vm417, %v954, %v956
      %962 = vst [vmem:[#allocation4 + $0xc0] sm:$0xff] %v957
      %963 = vst [vmem:[#allocation4 + $0xc8] sm:$0xff] %v958
      %964 = vst.msk [vmem:[#allocation4 + $0xd0] sm:$0xff] %vm803, %v956
      %v965 = vld [vmem:[#allocation3] sm:$0xff]
      %v966 = vld [vmem:[#allocation3 + $0x8] sm:$0xff]
      %v967 = vld [vmem:[#allocation3 + $0x10] sm:$0xff]
      %971 = vrot.lane.b32.xlu0 %v965, 104
      %v972 = vpop.permute.xlu0 %971
      %973 = vrot.lane.b32.xlu0 %v966, 104
      %v974 = vpop.permute.xlu0 %973
      %975 = vrot.lane.b32.xlu0 %v967, 104
      %v976 = vpop.permute.xlu0 %975
      %v977 = vsel %vm438, %v972, %v974
      %v978 = vsel %vm438, %v974, %v976
      %982 = vst [vmem:[#allocation4 + $0xd8] sm:$0xff] %v977
      %983 = vst [vmem:[#allocation4 + $0xe0] sm:$0xff] %v978
      %984 = vst.msk [vmem:[#allocation4 + $0xe8] sm:$0xff] %vm803, %v976
      %v985 = vld [vmem:[#allocation3] sm:$0xff]
      %v986 = vld [vmem:[#allocation3 + $0x8] sm:$0xff]
      %v987 = vld [vmem:[#allocation3 + $0x10] sm:$0xff]
      %991 = vrot.lane.b32.xlu0 %v985, 88
      %v992 = vpop.permute.xlu0 %991
      %993 = vrot.lane.b32.xlu0 %v986, 88
      %v994 = vpop.permute.xlu0 %993
      %995 = vrot.lane.b32.xlu0 %v987, 88
      %v996 = vpop.permute.xlu0 %995
      %v997 = vsel %vm458, %v992, %v994
      %v998 = vsel %vm458, %v994, %v996
      %1002 = vst [vmem:[#allocation4 + $0xf0] sm:$0xff] %v997
      %1003 = vst [vmem:[#allocation4 + $0xf8] sm:$0xff] %v998
      %1004 = vst.msk [vmem:[#allocation4 + $0x100] sm:$0xff] %vm803, %v996
      %v1005 = vld [vmem:[#allocation3] sm:$0xff]
      %v1006 = vld [vmem:[#allocation3 + $0x8] sm:$0xff]
      %v1007 = vld [vmem:[#allocation3 + $0x10] sm:$0xff]
      %1011 = vrot.lane.b32.xlu0 %v1005, 87
      %v1012 = vpop.permute.xlu0 %1011
      %1013 = vrot.lane.b32.xlu0 %v1006, 87
      %v1014 = vpop.permute.xlu0 %1013
      %1015 = vrot.lane.b32.xlu0 %v1007, 87
      %v1016 = vpop.permute.xlu0 %1015
      %v1017 = vsel %vm479, %v1012, %v1014
      %v1018 = vsel %vm479, %v1014, %v1016
      %1022 = vst [vmem:[#allocation4 + $0x108] sm:$0xff] %v1017
      %1023 = vst [vmem:[#allocation4 + $0x110] sm:$0xff] %v1018
      %1024 = vst.msk [vmem:[#allocation4 + $0x118] sm:$0xff] %vm803, %v1016
      %v1025 = vld [vmem:[#allocation3] sm:$0xff]
      %v1026 = vld [vmem:[#allocation3 + $0x8] sm:$0xff]
      %v1027 = vld [vmem:[#allocation3 + $0x10] sm:$0xff]
      %1031 = vrot.lane.b32.xlu0 %v1025, 86
      %v1032 = vpop.permute.xlu0 %1031
      %1033 = vrot.lane.b32.xlu0 %v1026, 86
      %v1034 = vpop.permute.xlu0 %1033
      %1035 = vrot.lane.b32.xlu0 %v1027, 86
      %v1036 = vpop.permute.xlu0 %1035
      %v1037 = vsel %vm499, %v1032, %v1034
      %v1038 = vsel %vm499, %v1034, %v1036
      %1042 = vst [vmem:[#allocation4 + $0x120] sm:$0xff] %v1037
      %1043 = vst [vmem:[#allocation4 + $0x128] sm:$0xff] %v1038
      %1044 = vst.msk [vmem:[#allocation4 + $0x130] sm:$0xff] %vm803, %v1036
      %v1045 = vld [vmem:[#allocation3] sm:$0xff]
      %v1046 = vld [vmem:[#allocation3 + $0x8] sm:$0xff]
      %v1047 = vld [vmem:[#allocation3 + $0x10] sm:$0xff]
      %1051 = vrot.lane.b32.xlu0 %v1045, 85
      %v1052 = vpop.permute.xlu0 %1051
      %1053 = vrot.lane.b32.xlu0 %v1046, 85
      %v1054 = vpop.permute.xlu0 %1053
      %1055 = vrot.lane.b32.xlu0 %v1047, 85
      %v1056 = vpop.permute.xlu0 %1055
      %v1057 = vsel %vm520, %v1052, %v1054
      %v1058 = vsel %vm520, %v1054, %v1056
      %1062 = vst [vmem:[#allocation4 + $0x138] sm:$0xff] %v1057
      %1063 = vst [vmem:[#allocation4 + $0x140] sm:$0xff] %v1058
      %1064 = vst.msk [vmem:[#allocation4 + $0x148] sm:$0xff] %vm803, %v1056
      %v1065 = vld [vmem:[#allocation3] sm:$0xff]
      %v1066 = vld [vmem:[#allocation3 + $0x8] sm:$0xff]
      %v1067 = vld [vmem:[#allocation3 + $0x10] sm:$0xff]
      %1071 = vrot.lane.b32.xlu0 %v1065, 84
      %v1072 = vpop.permute.xlu0 %1071
      %1073 = vrot.lane.b32.xlu0 %v1066, 84
      %v1074 = vpop.permute.xlu0 %1073
      %1075 = vrot.lane.b32.xlu0 %v1067, 84
      %v1076 = vpop.permute.xlu0 %1075
      %v1077 = vsel %vm540, %v1072, %v1074
      %v1078 = vsel %vm540, %v1074, %v1076
      %1082 = vst [vmem:[#allocation4 + $0x150] sm:$0xff] %v1077
      %1083 = vst [vmem:[#allocation4 + $0x158] sm:$0xff] %v1078
      %1084 = vst.msk [vmem:[#allocation4 + $0x160] sm:$0xff] %vm803, %v1076
      %v1085 = vld [vmem:[%s3] sm:$0xf]
      %v1086 = vld [vmem:[#allocation4] sm:$0xff]
      %v1087 = vld [vmem:[#allocation4 + $0x8] sm:$0xff]
      %v1088 = vld [vmem:[#allocation4 + $0x10] sm:$0xff]
      %v1089 = vld [vmem:[#allocation4 + $0x18] sm:$0xff]
      %v1090 = vld [vmem:[#allocation4 + $0x20] sm:$0xff]
      %v1091 = vld [vmem:[#allocation4 + $0x28] sm:$0xff]
      %v1092 = vld [vmem:[#allocation4 + $0x30] sm:$0xff]
      %v1093 = vld [vmem:[#allocation4 + $0x38] sm:$0xff]
      %v1094 = vld [vmem:[#allocation4 + $0x40] sm:$0xff]
      %v1095 = vld [vmem:[#allocation4 + $0x48] sm:$0xff]
      %v1096 = vld [vmem:[#allocation4 + $0x50] sm:$0xff]
      %v1097 = vld [vmem:[#allocation4 + $0x58] sm:$0xff]
      %v1098 = vld [vmem:[#allocation4 + $0x60] sm:$0xff]
      %v1099 = vld [vmem:[#allocation4 + $0x68] sm:$0xff]
      %v1100 = vld [vmem:[#allocation4 + $0x70] sm:$0xff]
      %v1101 = vld [vmem:[#allocation4 + $0x78] sm:$0xff]
      %v1102 = vld [vmem:[#allocation4 + $0x80] sm:$0xff]
      %v1103 = vld [vmem:[#allocation4 + $0x88] sm:$0xff]
      %v1104 = vld [vmem:[#allocation4 + $0x90] sm:$0xff]
      %v1105 = vld [vmem:[#allocation4 + $0x98] sm:$0xff]
      %v1106 = vld [vmem:[#allocation4 + $0xa0] sm:$0xff]
      %v1107 = vld [vmem:[#allocation4 + $0xa8] sm:$0xff]
      %v1108 = vld [vmem:[#allocation4 + $0xb0] sm:$0xff]
      %v1109 = vld [vmem:[#allocation4 + $0xb8] sm:$0xff]
      %v1110 = vld [vmem:[#allocation4 + $0xc0] sm:$0xff]
      %v1111 = vld [vmem:[#allocation4 + $0xc8] sm:$0xff]
      %v1112 = vld [vmem:[#allocation4 + $0xd0] sm:$0xff]
      %v1113 = vld [vmem:[#allocation4 + $0xd8] sm:$0xff]
      %v1114 = vld [vmem:[#allocation4 + $0xe0] sm:$0xff]
      %v1115 = vld [vmem:[#allocation4 + $0xe8] sm:$0xff]
      %v1116 = vld [vmem:[#allocation4 + $0xf0] sm:$0xff]
      %v1117 = vld [vmem:[#allocation4 + $0xf8] sm:$0xff]
      %v1118 = vld [vmem:[#allocation4 + $0x100] sm:$0xff]
      %v1119 = vld [vmem:[#allocation4 + $0x108] sm:$0xff]
      %v1120 = vld [vmem:[#allocation4 + $0x110] sm:$0xff]
      %v1121 = vld [vmem:[#allocation4 + $0x118] sm:$0xff]
      %v1122 = vld [vmem:[#allocation4 + $0x120] sm:$0xff]
      %v1123 = vld [vmem:[#allocation4 + $0x128] sm:$0xff]
      %v1124 = vld [vmem:[#allocation4 + $0x130] sm:$0xff]
      %v1125 = vld [vmem:[#allocation4 + $0x138] sm:$0xff]
      %v1126 = vld [vmem:[#allocation4 + $0x140] sm:$0xff]
      %v1127 = vld [vmem:[#allocation4 + $0x148] sm:$0xff]
      %v1128 = vld [vmem:[#allocation4 + $0x150] sm:$0xff]
      %v1129 = vld [vmem:[#allocation4 + $0x158] sm:$0xff]
      %v1130 = vld [vmem:[#allocation4 + $0x160] sm:$0xff]
      %v1131 = vld [vmem:[%s4] sm:$0xf]
      %1133 = vset.pattern.permute.xlu0 0
      %1134 = vperm.xlu0 %1133, %v1131
      %v1135 = vpop.permute.xlu0 %1134
      %vm1137 = vcmask 982016
      %v1139 = vsel %vm1137, %v1085, 0
      %1141 = vmatprep.subr.mxu0 %v1087
      %1142 = vmatpush1.msra.mxu0 %v1086
      %1143 = vmatprep.subr.mxu0 %v1090
      %1144 = vmatpush1.msra.mxu0 %v1089
      %1145 = vmatprep.subr.mxu0 %v1093
      %1146 = vmatpush1.msra.mxu0 %v1092
      %1147 = vmatprep.subr.mxu0 %v1096
      %1148 = vmatpush1.msra.mxu0 %v1095
      %1149 = vmatprep.subr.mxu0 %v1099
      %1150 = vmatpush1.msra.mxu0 %v1098
      %1151 = vmatprep.subr.mxu0 %v1102
      %1152 = vmatpush1.msra.mxu0 %v1101
      %1153 = vmatprep.subr.mxu0 %v1105
      %1154 = vmatpush1.msra.mxu0 %v1104
      %1155 = vmatprep.subr.mxu0 %v1108
      %1156 = vmatpush1.msra.mxu0 %v1107
      %1157 = vmatprep.subr.mxu0 %v1111
      %1158 = vmatpush1.msra.mxu0 %v1110
      %1159 = vmatprep.subr.mxu0 %v1114
      %1160 = vmatpush1.msra.mxu0 %v1113
      %1161 = vmatprep.subr.mxu0 %v1117
      %1162 = vmatpush1.msra.mxu0 %v1116
      %1163 = vmatprep.subr.mxu0 %v1120
      %1164 = vmatpush1.msra.mxu0 %v1119
      %1165 = vmatprep.subr.mxu0 %v1123
      %1166 = vmatpush1.msra.mxu0 %v1122
      %1167 = vmatprep.subr.mxu0 %v1126
      %1168 = vmatpush1.msra.mxu0 %v1125
      %1169 = vmatprep.subr.mxu0 %v1129
      %1170 = vmatpush1.msra.mxu0 %v1128
      %1171 = vmatprep.subr.mxu0 0.0
      %1172 = vmatpush1.msra.mxu0 0.0
      %1173 = vmatprep.subr.mxu0 0.0
      %1174 = vmatpush1.msra.mxu0 0.0
      %1175 = vmatprep.subr.mxu0 0.0
      %1176 = vmatpush1.msra.mxu0 0.0
      %1177 = vmatprep.subr.mxu0 0.0
      %1178 = vmatpush1.msra.mxu0 0.0
      %1179 = vmatprep.subr.mxu0 0.0
      %1180 = vmatpush1.msra.mxu0 0.0
      %1181 = vmatprep.subr.mxu0 0.0
      %1182 = vmatpush1.msra.mxu0 0.0
      %1183 = vmatprep.subr.mxu0 0.0
      %1184 = vmatpush1.msra.mxu0 0.0
      %1185 = vmatprep.subr.mxu0 0.0
      %1186 = vmatpush1.msra.mxu0 0.0
      %1187 = vmatprep.subr.mxu0 0.0
      %1188 = vmatpush1.msra.mxu0 0.0
      %1189 = vmatprep.subr.mxu0 0.0
      %1190 = vmatpush1.msra.mxu0 0.0
      %1191 = vmatprep.subr.mxu0 0.0
      %1192 = vmatpush1.msra.mxu0 0.0
      %1193 = vmatprep.subr.mxu0 0.0
      %1194 = vmatpush1.msra.mxu0 0.0
      %1195 = vmatprep.subr.mxu0 0.0
      %1196 = vmatpush1.msra.mxu0 0.0
      %1197 = vmatprep.subr.mxu0 0.0
      %1198 = vmatpush1.msra.mxu0 0.0
      %1199 = vmatprep.subr.mxu0 0.0
      %1200 = vmatpush1.msra.mxu0 0.0
      %1201 = vmatprep.subr.mxu0 0.0
      %1202 = vmatpush1.msra.mxu0 0.0
      %1203 = vmatprep.subr.mxu0 0.0
      %1204 = vmatpush1.msra.mxu0 0.0
      %1205 = vmatprep.mubr.f32.mxu0 0.0
      %1206 = vmatmul.mubr.f32.gmra.mrb[0].mxu0 %v1139
      %v1207 = vpop.f32.mrb[0].mxu0
      %v1208 = vadd.f32 %v1135, %v1207
      %v1209 = vpop.f32.mrb[0].mxu0
      %v1210 = vadd.f32 %v1135, %v1209
      %1211 = vdwg.mxu0
      %1212 = vmatprep.subr.mxu0 0.0
      %1213 = vmatpush1.msra.mxu0 %v1088
      %1214 = vmatprep.subr.mxu0 0.0
      %1215 = vmatpush1.msra.mxu0 %v1091
      %1216 = vmatprep.subr.mxu0 0.0
      %1217 = vmatpush1.msra.mxu0 %v1094
      %1218 = vmatprep.subr.mxu0 0.0
      %1219 = vmatpush1.msra.mxu0 %v1097
      %1220 = vmatprep.subr.mxu0 0.0
      %1221 = vmatpush1.msra.mxu0 %v1100
      %1222 = vmatprep.subr.mxu0 0.0
      %1223 = vmatpush1.msra.mxu0 %v1103
      %1224 = vmatprep.subr.mxu0 0.0
      %1225 = vmatpush1.msra.mxu0 %v1106
      %1226 = vmatprep.subr.mxu0 0.0
      %1227 = vmatpush1.msra.mxu0 %v1109
      %1228 = vmatprep.subr.mxu0 0.0
      %1229 = vmatpush1.msra.mxu0 %v1112
      %1230 = vmatprep.subr.mxu0 0.0
      %1231 = vmatpush1.msra.mxu0 %v1115
      %1232 = vmatprep.subr.mxu0 0.0
      %1233 = vmatpush1.msra.mxu0 %v1118
      %1234 = vmatprep.subr.mxu0 0.0
      %1235 = vmatpush1.msra.mxu0 %v1121
      %1236 = vmatprep.subr.mxu0 0.0
      %1237 = vmatpush1.msra.mxu0 %v1124
      %1238 = vmatprep.subr.mxu0 0.0
      %1239 = vmatpush1.msra.mxu0 %v1127
      %1240 = vmatprep.subr.mxu0 0.0
      %1241 = vmatpush1.msra.mxu0 %v1130
      %1242 = vmatprep.subr.mxu0 0.0
      %1243 = vmatpush1.msra.mxu0 0.0
      %1244 = vmatprep.subr.mxu0 0.0
      %1245 = vmatpush1.msra.mxu0 0.0
      %1246 = vmatprep.subr.mxu0 0.0
      %1247 = vmatpush1.msra.mxu0 0.0
      %1248 = vmatprep.subr.mxu0 0.0
      %1249 = vmatpush1.msra.mxu0 0.0
      %1250 = vmatprep.subr.mxu0 0.0
      %1251 = vmatpush1.msra.mxu0 0.0
      %1252 = vmatprep.subr.mxu0 0.0
      %1253 = vmatpush1.msra.mxu0 0.0
      %1254 = vmatprep.subr.mxu0 0.0
      %1255 = vmatpush1.msra.mxu0 0.0
      %1256 = vmatprep.subr.mxu0 0.0
      %1257 = vmatpush1.msra.mxu0 0.0
      %1258 = vmatprep.subr.mxu0 0.0
      %1259 = vmatpush1.msra.mxu0 0.0
      %1260 = vmatprep.subr.mxu0 0.0
      %1261 = vmatpush1.msra.mxu0 0.0
      %1262 = vmatprep.subr.mxu0 0.0
      %1263 = vmatpush1.msra.mxu0 0.0
      %1264 = vmatprep.subr.mxu0 0.0
      %1265 = vmatpush1.msra.mxu0 0.0
      %1266 = vmatprep.subr.mxu0 0.0
      %1267 = vmatpush1.msra.mxu0 0.0
      %1268 = vmatprep.subr.mxu0 0.0
      %1269 = vmatpush1.msra.mxu0 0.0
      %1270 = vmatprep.subr.mxu0 0.0
      %1271 = vmatpush1.msra.mxu0 0.0
      %1272 = vmatprep.subr.mxu0 0.0
      %1273 = vmatpush1.msra.mxu0 0.0
      %1274 = vmatprep.subr.mxu0 0.0
      %1275 = vmatpush1.msra.mxu0 0.0
      %1276 = vmatprep.mubr.f32.mxu0 0.0
      %1277 = vmatmul.mubr.f32.gmra.mrb[0].mxu0 %v1139
      %v1278 = vpop.f32.mrb[0].mxu0
      %v1279 = vadd.f32 %v1135, %v1278
      %v1280 = vpop.f32.mrb[0].mxu0
      %1281 = vdwg.mxu0
      %v1282 = vxor.u32 %v1208, 2147483648
      %v1283 = vxor.u32 %v1210, 2147483648
      %v1284 = vxor.u32 %v1279, 2147483648
      %v1285 = vmul.f32 %v1282, 1.442695
      %v1286 = vpow.pop %v1285
      %v1287 = vmul.f32 %v1283, 1.442695
      %v1288 = vpow.pop %v1287
      %v1289 = vmul.f32 %v1284, 1.442695
      %v1290 = vpow.pop %v1289
      %v1291 = vadd.f32 %v1286, 1.0
      %v1292 = vadd.f32 %v1288, 1.0
      %v1293 = vadd.f32 %v1290, 1.0
      %v1294 = vrcp.pop %v1291
      %v1295 = vmul.f32 1.0, %v1294
      %v1296 = vrcp.pop %v1292
      %v1297 = vmul.f32 1.0, %v1296
      %v1298 = vrcp.pop %v1293
      %v1299 = vmul.f32 1.0, %v1298
      %v1300 = vmul.f32 %v1208, %v1295
      %v1301 = vmul.f32 %v1210, %v1297
      %v1302 = vmul.f32 %v1279, %v1299
      %v1305 = vcombine.low %v1300, %v1301
      %1307 = vst [vmem:[%s251] sm:$0xff] %v1305
      %1308 = vst.msk [vmem:[%s251 + $0x8] sm:$0xf] %vm259, %v1302
      %p1309 = scmp.lt.s32.totalorder %s17, 1
      %s1310 = scalar_select %p1309, %s17, 1
      %s1311 = smul.addr %s1310, 3
      %s1312 = smul.addr %s1311, 4
      %s1313 = scalar_lea.vmem %s6, %s1312
      // Predicated region
      $region45: #{sebastian_conv_block2.1} parent=43 // pred_check
        %p1314 = pneg %p166
      $region46: #{sebastian_conv_block2.1} parent=43 // pred_check_branch
        %1316 = sbr.rel (%p1314) target = $region48
      $region47: #{sebastian_conv_block2.1} parent=43 // pred_region
        _
      $region48: #{sebastian_conv_block2.1} parent=43 // pred_fallthru
        _
    $region44: #{sebastian_conv_block2.1} parent=5 // pred_fallthru
      _
    %p1317 = scmp.le.s32.totalorder 2, %s12
    // Predicated region
    $region49: #{sebastian_conv_block2.1} parent=5 // pred_check
      %p1318 = pneg %p1317
    $region50: #{sebastian_conv_block2.1} parent=5 // pred_check_branch
      %1320 = sbr.rel (%p1318) target = $region52
    $region51: #{sebastian_conv_block2.1} parent=5 // pred_region
      %s1321 = ssub.s32 %s12, 2
      // Predicated region
      $region53: #{sebastian_conv_block2.1} parent=51 // pred_check
        %p1322 = pneg %p172
      $region54: #{sebastian_conv_block2.1} parent=51 // pred_check_branch
        %1324 = sbr.rel (%p1322) target = $region56
      $region55: #{sebastian_conv_block2.1} parent=51 // pred_region
        %p1325 = scmp.lt.s32.totalorder %s18, 1
        %s1326 = scalar_select %p1325, %s18, 1
        %s1327 = smul.addr %s1326, 3
        %s1328 = smul.addr %s1327, 4
        %s1329 = scalar_lea.vmem %s6, %s1328
      $region56: #{sebastian_conv_block2.1} parent=51 // pred_fallthru
        _
    $region52: #{sebastian_conv_block2.1} parent=5 // pred_fallthru
      _
  $region6: #{sebastian_conv_block2.1} parent=0 // loop_footer
    %s16 = sadd.s32 1, %s12
  $region7: #{sebastian_conv_block2.1} parent=0 // loop_footer_branch
    %11 = sbr.rel target = $region3
  $region8: #{sebastian_conv_block2.1} parent=0 // loop_exit
    _

</llo_original>
